<compile_context>
chip_gen: v7x
topology: tpu7x:2x2x1
jax: 0.10.0
libtpu: 0.0.40
codegen_flags: <defaults>
</compile_context>

<pallas_src>
import functools

import jax
import jax.numpy as jnp
from jax.experimental import pallas as pl
from jax.experimental.pallas import tpu as pltpu


def lstm_regressor_kernel(x_ref, wih_ref, whh_ref, b_ref, wout_ref, bout_ref,
                          y_ref, gpre_scr, h_scr, c_scr,
                          *, T, Tc, Bp, Hp, unroll):
    chunk = pl.program_id(0)
    n_chunks = pl.num_programs(0)

    # ---- Init persistent recurrence state on the first chunk.
    @pl.when(chunk == 0)
    def _():
        h_scr[...] = jnp.zeros_like(h_scr)
        c_scr[...] = jnp.zeros_like(c_scr)

    # ---- Phase 1 (per chunk): hoisted input projection for Tc steps at once.
    # gpre[t*Bp + b, :] = x[t, b, :] @ W_ih^T + (b_ih + b_hh)   -> (Tc*Bp, 4*Hp)
    gpre_scr[...] = (
        jnp.dot(x_ref[...], wih_ref[...], preferred_element_type=jnp.float32)
        + b_ref[...])

    # ---- Phase 2: serial recurrence over the Tc steps of this chunk.
    needs_mask = (T % Tc) != 0          # static Python bool
    t0 = chunk * Tc

    def step(t, carry):
        h, c = carry
        row = pl.multiple_of(t * Bp, 8)          # sublane-aligned slice start
        gates = gpre_scr[pl.ds(row, Bp), :] + jnp.dot(
            h, whh_ref[...], preferred_element_type=jnp.float32)
        # PyTorch gate ordering: i, f, g, o.  Each slice is a full lane tile.
        i = jax.nn.sigmoid(gates[:, 0 * Hp:1 * Hp])
        f = jax.nn.sigmoid(gates[:, 1 * Hp:2 * Hp])
        g = jnp.tanh(gates[:, 2 * Hp:3 * Hp])
        o = jax.nn.sigmoid(gates[:, 3 * Hp:4 * Hp])
        c_new = f * c + i * g
        h_new = o * jnp.tanh(c_new)
        if needs_mask:                            # only when T padded up to Tp
            valid = (t0 + t) < T
            h_new = jnp.where(valid, h_new, h)
            c_new = jnp.where(valid, c_new, c)
        return h_new, c_new

    h, c = jax.lax.fori_loop(0, Tc, step, (h_scr[...], c_scr[...]),
                             unroll=unroll)
    h_scr[...] = h
    c_scr[...] = c

    # ---- Linear head on the last hidden state (padded rows/cols are zero).
    @pl.when(chunk == n_chunks - 1)
    def _():
        y = jnp.dot(h, wout_ref[...], preferred_element_type=jnp.float32)
        y_ref[...] = (y + bout_ref[...]).astype(y_ref.dtype)


def lstm_regressor(x, w_ih, w_hh, b_ih, b_hh, w_out, b_out, *, chunk_steps=None):
    """x: (T, B, D).  Weights in PyTorch layout:
       w_ih (4H, D), w_hh (4H, H), b_ih/b_hh (4H,), w_out (O, H), b_out (O,)."""
    T, B, D = x.shape
    fourH = w_ih.shape[0]
    H = fourH // 4
    O = w_out.shape[0]

    Hp = ((H + 127) // 128) * 128          # pad each gate to a full lane tile
    Bp = ((B + 7) // 8) * 8                # sublane-aligned batch
    Op = ((O + 127) // 128) * 128          # lane-dense output store

    # Time-chunk size: keep the per-chunk gate-preactivation buffer ~<= 2 MiB.
    # TODO(synk): halve the chunk target on v5e (16 MiB default scoped VMEM).
    bytes_per_step = Bp * 4 * Hp * 4
    if chunk_steps is None:
        chunk_steps = max(1, min(T, (2 << 20) // bytes_per_step))
    Tc = int(chunk_steps)
    n_chunks = pl.cdiv(T, Tc)
    Tp = n_chunks * Tc

    f32 = jnp.float32
    # Split per gate (PyTorch order i,f,g,o), zero-pad the per-gate hidden width
    # to Hp, and lay weights out so gate k occupies lanes [k*Hp, (k+1)*Hp).
    w_ih_g = jnp.asarray(w_ih, f32).reshape(4, H, D)
    w_hh_g = jnp.asarray(w_hh, f32).reshape(4, H, H)
    b_g = jnp.asarray(b_ih + b_hh, f32).reshape(4, H)

    w_ih_g = jnp.pad(w_ih_g, ((0, 0), (0, Hp - H), (0, 0)))       # (4, Hp, D)
    w_hh_g = jnp.pad(w_hh_g, ((0, 0), (0, Hp - H), (0, Hp - H)))  # (4, Hp, Hp)
    b_g = jnp.pad(b_g, ((0, 0), (0, Hp - H)))                     # (4, Hp)

    wih_pad = jnp.transpose(w_ih_g, (2, 0, 1)).reshape(D, 4 * Hp)   # (D, 4Hp)
    whh_pad = jnp.transpose(w_hh_g, (2, 0, 1)).reshape(Hp, 4 * Hp)  # (Hp, 4Hp)
    b_pad = b_g.reshape(1, 4 * Hp)                                   # (1, 4Hp)

    wout_pad = jnp.pad(jnp.asarray(w_out, f32).T,
                       ((0, Hp - H), (0, Op - O)))                   # (Hp, Op)
    bout_pad = jnp.pad(jnp.asarray(b_out, f32)[None, :],
                       ((0, 0), (0, Op - O)))                        # (1, Op)

    # Pad x in time (to Tp) and batch (to Bp); padded entries are zero and are
    # either masked (time) or sliced off at the end (batch).
    xp = jnp.zeros((Tp, Bp, D), f32).at[:T, :B, :].set(jnp.asarray(x, f32))
    x2d = xp.reshape(Tp * Bp, D)                                     # (Tp*Bp, D)

    # VMEM budget: resident buffers + double-buffer headroom, capped < v7x 64MiB.
    def nbytes(*shape):
        n = 4
        for s in shape:
            n *= s
        return n
    resident = (2 * nbytes(Tc * Bp, D)            # x chunk (double-buffered)
                + 2 * nbytes(D, 4 * Hp)           # wih
                + 2 * nbytes(Hp, 4 * Hp)          # whh
                + 2 * nbytes(1, 4 * Hp)           # bias
                + 2 * nbytes(Hp, Op)              # wout
                + 2 * nbytes(1, Op)               # bout
                + 2 * nbytes(Bp, Op)              # output
                + nbytes(Tc * Bp, 4 * Hp)         # gpre scratch
                + 2 * nbytes(Bp, Hp))             # h, c scratch
    vmem_limit = min(max(2 * resident + (4 << 20), 16 << 20), 56 << 20)

    grid_spec = pltpu.PrefetchScalarGridSpec(
        num_scalar_prefetch=0,
        grid=(n_chunks,),
        in_specs=[
            pl.BlockSpec((Tc * Bp, D), lambda c: (c, 0)),      # x chunk (streamed)
            pl.BlockSpec((D, 4 * Hp), lambda c: (0, 0)),       # W_ih (resident)
            pl.BlockSpec((Hp, 4 * Hp), lambda c: (0, 0)),      # W_hh (resident)
            pl.BlockSpec((1, 4 * Hp), lambda c: (0, 0)),       # bias
            pl.BlockSpec((Hp, Op), lambda c: (0, 0)),          # W_out
            pl.BlockSpec((1, Op), lambda c: (0, 0)),           # b_out
        ],
        out_specs=pl.BlockSpec((Bp, Op), lambda c: (0, 0)),
        scratch_shapes=[
            pltpu.VMEM((Tc * Bp, 4 * Hp), jnp.float32),        # chunk gate preacts
            pltpu.VMEM((Bp, Hp), jnp.float32),                 # h (persists)
            pltpu.VMEM((Bp, Hp), jnp.float32),                 # c (persists)
        ],
    )

    kernel = functools.partial(lstm_regressor_kernel,
                               T=T, Tc=Tc, Bp=Bp, Hp=Hp,
                               unroll=min(Tc, 8))

    y_full = pl.pallas_call(
        kernel,
        out_shape=jax.ShapeDtypeStruct((Bp, Op), jnp.float32),
        grid_spec=grid_spec,
        compiler_params=pltpu.CompilerParams(
            dimension_semantics=("arbitrary",),    # time chunks are sequential
            vmem_limit_bytes=int(vmem_limit)),
    )(x2d, wih_pad, whh_pad, b_pad, wout_pad, bout_pad)

    return y_full[:B, :O]


def lstm_regressor_ref(x, w_ih, w_hh, b_ih, b_hh, w_out, b_out):
    """Pure-JAX reference (mirrors torch.nn.LSTM + Linear semantics)."""
    T, B, D = x.shape
    H = w_hh.shape[1]

    def step(carry, x_t):
        h, c = carry
        gates = x_t @ w_ih.T + b_ih + h @ w_hh.T + b_hh
        i = jax.nn.sigmoid(gates[:, 0 * H:1 * H])
        f = jax.nn.sigmoid(gates[:, 1 * H:2 * H])
        g = jnp.tanh(gates[:, 2 * H:3 * H])
        o = jax.nn.sigmoid(gates[:, 3 * H:4 * H])
        c = f * c + i * g
        h = o * jnp.tanh(c)
        return (h, c), h

    h0 = jnp.zeros((B, H), jnp.float32)
    c0 = jnp.zeros((B, H), jnp.float32)
    (h_T, _), _ = jax.lax.scan(step, (h0, c0), x)
    return h_T @ w_out.T + b_out


if __name__ == "__main__":
    T, B, D, H, O = 8, 2, 4, 32, 8

    key = jax.random.PRNGKey(0)
    ks = jax.random.split(key, 7)

    # Deterministic synthetic init (xavier-uniform for LSTM weights as in the
    # module, uniform(-1/sqrt(H), 1/sqrt(H)) for biases / linear head).
    def xavier(k, shape):
        fan_in, fan_out = shape[1], shape[0]
        lim = (6.0 / (fan_in + fan_out)) ** 0.5
        return jax.random.uniform(k, shape, jnp.float32, -lim, lim)

    bound = 1.0 / (H ** 0.5)
    w_ih = xavier(ks[0], (4 * H, D))
    w_hh = xavier(ks[1], (4 * H, H))
    b_ih = jax.random.uniform(ks[2], (4 * H,), jnp.float32, -bound, bound)
    b_hh = jax.random.uniform(ks[3], (4 * H,), jnp.float32, -bound, bound)
    w_out = jax.random.uniform(ks[4], (O, H), jnp.float32, -bound, bound)
    b_out = jax.random.uniform(ks[5], (O,), jnp.float32, -bound, bound)

    x = jax.random.normal(ks[6], (T, B, D), jnp.float32)

    y = lstm_regressor(x, w_ih, w_hh, b_ih, b_hh, w_out, b_out)
    y = jax.block_until_ready(y)

    y_ref = lstm_regressor_ref(x, w_ih, w_hh, b_ih, b_hh, w_out, b_out)
    assert y.shape == (B, O)
    assert jnp.allclose(y, y_ref, atol=1e-5, rtol=1e-5), (y, y_ref)

    print("KERNEL_OK")
</pallas_src>

<mosaic_0001>
module attributes {stable_mosaic.version = 11 : i64} {
  func.func @lstm_regressor_kernel(%arg0: i32, %arg1: memref<64x4xf32, #tpu.memory_space<vmem>>, %arg2: memref<4x512xf32, #tpu.memory_space<vmem>>, %arg3: memref<128x512xf32, #tpu.memory_space<vmem>>, %arg4: memref<1x512xf32, #tpu.memory_space<vmem>>, %arg5: memref<128x128xf32, #tpu.memory_space<vmem>>, %arg6: memref<1x128xf32, #tpu.memory_space<vmem>>, %arg7: memref<8x128xf32, #tpu.memory_space<vmem>>, %arg8: memref<64x512xf32, #tpu.memory_space<vmem>>, %arg9: memref<8x128xf32, #tpu.memory_space<vmem>>, %arg10: memref<8x128xf32, #tpu.memory_space<vmem>>) attributes {dimension_semantics = [#tpu.dimension_semantics<arbitrary>], iteration_bounds = array<i64: 1>, scalar_prefetch = 0 : i64, scratch_operands = 3 : i64, tpu.core_type = #tpu.core_type<tc>, window_params = [{transform_indices = @transform_0, window_bounds = array<i64: 64, 4>}, {pipeline_mode = #tpu.pipeline_mode<synchronous>, transform_indices = @transform_1, window_bounds = array<i64: 4, 512>}, {pipeline_mode = #tpu.pipeline_mode<synchronous>, transform_indices = @transform_2, window_bounds = array<i64: 128, 512>}, {pipeline_mode = #tpu.pipeline_mode<synchronous>, transform_indices = @transform_3, window_bounds = array<i64: 1, 512>}, {pipeline_mode = #tpu.pipeline_mode<synchronous>, transform_indices = @transform_4, window_bounds = array<i64: 128, 128>}, {pipeline_mode = #tpu.pipeline_mode<synchronous>, transform_indices = @transform_5, window_bounds = array<i64: 1, 128>}, {pipeline_mode = #tpu.pipeline_mode<synchronous>, transform_indices = @transform_6, window_bounds = array<i64: 8, 128>}]} {
    %c0_i32 = arith.constant 0 : i32
    %0 = arith.cmpi eq, %arg0, %c0_i32 : i32
    %1 = arith.extui %0 : i1 to i32
    %c0_i32_0 = arith.constant 0 : i32
    %2 = arith.cmpi ne, %1, %c0_i32_0 : i32
    scf.if %2 {
      %cst_83 = arith.constant 0.000000e+00 : f32
      %273 = vector.broadcast %cst_83 : f32 to vector<8x128xf32>
      %c0_84 = arith.constant 0 : index
      %c0_85 = arith.constant 0 : index
      %274 = vector.load %arg9[%c0_84, %c0_85] : memref<8x128xf32, #tpu.memory_space<vmem>>, vector<8x128xf32>
      tpu.vector_store %arg9[%c0_84, %c0_85], %273 {strides = array<i32>} : memref<8x128xf32, #tpu.memory_space<vmem>>, vector<8x128xf32>,
      %cst_86 = arith.constant 0.000000e+00 : f32
      %275 = vector.broadcast %cst_86 : f32 to vector<8x128xf32>
      %c0_87 = arith.constant 0 : index
      %c0_88 = arith.constant 0 : index
      %276 = vector.load %arg10[%c0_87, %c0_88] : memref<8x128xf32, #tpu.memory_space<vmem>>, vector<8x128xf32>
      tpu.vector_store %arg10[%c0_87, %c0_88], %275 {strides = array<i32>} : memref<8x128xf32, #tpu.memory_space<vmem>>, vector<8x128xf32>,
    } else {
    }
    %c0 = arith.constant 0 : index
    %c0_1 = arith.constant 0 : index
    %3 = vector.load %arg1[%c0, %c0_1] : memref<64x4xf32, #tpu.memory_space<vmem>>, vector<64x4xf32>
    %c0_2 = arith.constant 0 : index
    %c0_3 = arith.constant 0 : index
    %4 = vector.load %arg2[%c0_2, %c0_3] : memref<4x512xf32, #tpu.memory_space<vmem>>, vector<4x512xf32>
    %cst = arith.constant dense<0.000000e+00> : vector<64x512xf32>
    %5 = tpu.matmul %3, %4, %cst {dimension_numbers = #tpu.dot_dimension_numbers<[1], [0], [0], [1], [0, 0, 1, 1], [], []>} : vector<64x4xf32>, vector<4x512xf32>, vector<64x512xf32> -> vector<64x512xf32>
    %c0_4 = arith.constant 0 : index
    %c0_5 = arith.constant 0 : index
    %6 = vector.load %arg4[%c0_4, %c0_5] : memref<1x512xf32, #tpu.memory_space<vmem>>, vector<1x512xf32>
    %7 = vector.broadcast %6 : vector<1x512xf32> to vector<64x512xf32>
    %8 = arith.addf %5, %7 : vector<64x512xf32>
    %c0_6 = arith.constant 0 : index
    %c0_7 = arith.constant 0 : index
    %9 = vector.load %arg8[%c0_6, %c0_7] : memref<64x512xf32, #tpu.memory_space<vmem>>, vector<64x512xf32>
    tpu.vector_store %arg8[%c0_6, %c0_7], %8 {strides = array<i32>} : memref<64x512xf32, #tpu.memory_space<vmem>>, vector<64x512xf32>,
    %c0_8 = arith.constant 0 : index
    %c0_9 = arith.constant 0 : index
    %10 = vector.load %arg9[%c0_8, %c0_9] : memref<8x128xf32, #tpu.memory_space<vmem>>, vector<8x128xf32>
    %c0_10 = arith.constant 0 : index
    %c0_11 = arith.constant 0 : index
    %11 = vector.load %arg10[%c0_10, %c0_11] : memref<8x128xf32, #tpu.memory_space<vmem>>, vector<8x128xf32>
    %c0_i32_12 = arith.constant 0 : i32
    %c8_i32 = arith.constant 8 : i32
    %12 = arith.muli %c0_i32_12, %c8_i32 : i32
    %13 = tpu.assume_multiple %12, 8 : i32
    %14 = arith.index_cast %13 : i32 to index
    %c0_13 = arith.constant 0 : index
    %15 = vector.load %arg8[%14, %c0_13] : memref<64x512xf32, #tpu.memory_space<vmem>>, vector<8x512xf32>
    %c0_14 = arith.constant 0 : index
    %c0_15 = arith.constant 0 : index
    %16 = vector.load %arg3[%c0_14, %c0_15] : memref<128x512xf32, #tpu.memory_space<vmem>>, vector<128x512xf32>
    %cst_16 = arith.constant dense<0.000000e+00> : vector<8x512xf32>
    %17 = tpu.matmul %10, %16, %cst_16 {dimension_numbers = #tpu.dot_dimension_numbers<[1], [0], [0], [1], [0, 0, 1, 1], [], []>} : vector<8x128xf32>, vector<128x512xf32>, vector<8x512xf32> -> vector<8x512xf32>
    %18 = arith.addf %15, %17 : vector<8x512xf32>
    %19 = vector.extract_strided_slice %18 {offsets = [0, 0], sizes = [8, 128], strides = [1, 1]} : vector<8x512xf32> to vector<8x128xf32>
    %20 = arith.negf %19 : vector<8x128xf32>
    %21 = math.exp %20 : vector<8x128xf32>
    %cst_17 = arith.constant 1.000000e+00 : f32
    %22 = vector.broadcast %cst_17 : f32 to vector<8x128xf32>
    %23 = arith.addf %22, %21 : vector<8x128xf32>
    %24 = arith.divf %22, %23 : vector<8x128xf32>
    %25 = vector.extract_strided_slice %18 {offsets = [0, 128], sizes = [8, 128], strides = [1, 1]} : vector<8x512xf32> to vector<8x128xf32>
    %26 = arith.negf %25 : vector<8x128xf32>
    %27 = math.exp %26 : vector<8x128xf32>
    %cst_18 = arith.constant 1.000000e+00 : f32
    %28 = vector.broadcast %cst_18 : f32 to vector<8x128xf32>
    %29 = arith.addf %28, %27 : vector<8x128xf32>
    %30 = arith.divf %28, %29 : vector<8x128xf32>
    %31 = vector.extract_strided_slice %18 {offsets = [0, 256], sizes = [8, 128], strides = [1, 1]} : vector<8x512xf32> to vector<8x128xf32>
    %32 = math.tanh %31 : vector<8x128xf32>
    %33 = vector.extract_strided_slice %18 {offsets = [0, 384], sizes = [8, 128], strides = [1, 1]} : vector<8x512xf32> to vector<8x128xf32>
    %34 = arith.negf %33 : vector<8x128xf32>
    %35 = math.exp %34 : vector<8x128xf32>
    %cst_19 = arith.constant 1.000000e+00 : f32
    %36 = vector.broadcast %cst_19 : f32 to vector<8x128xf32>
    %37 = arith.addf %36, %35 : vector<8x128xf32>
    %38 = arith.divf %36, %37 : vector<8x128xf32>
    %39 = arith.mulf %30, %11 : vector<8x128xf32>
    %40 = arith.mulf %24, %32 : vector<8x128xf32>
    %41 = arith.addf %39, %40 : vector<8x128xf32>
    %42 = math.tanh %41 : vector<8x128xf32>
    %43 = arith.mulf %38, %42 : vector<8x128xf32>
    %c1_i32 = arith.constant 1 : i32
    %c8_i32_20 = arith.constant 8 : i32
    %44 = arith.muli %c1_i32, %c8_i32_20 : i32
    %45 = tpu.assume_multiple %44, 8 : i32
    %46 = arith.index_cast %45 : i32 to index
    %c0_21 = arith.constant 0 : index
    %47 = vector.load %arg8[%46, %c0_21] : memref<64x512xf32, #tpu.memory_space<vmem>>, vector<8x512xf32>
    %c0_22 = arith.constant 0 : index
    %c0_23 = arith.constant 0 : index
    %48 = vector.load %arg3[%c0_22, %c0_23] : memref<128x512xf32, #tpu.memory_space<vmem>>, vector<128x512xf32>
    %cst_24 = arith.constant dense<0.000000e+00> : vector<8x512xf32>
    %49 = tpu.matmul %43, %48, %cst_24 {dimension_numbers = #tpu.dot_dimension_numbers<[1], [0], [0], [1], [0, 0, 1, 1], [], []>} : vector<8x128xf32>, vector<128x512xf32>, vector<8x512xf32> -> vector<8x512xf32>
    %50 = arith.addf %47, %49 : vector<8x512xf32>
    %51 = vector.extract_strided_slice %50 {offsets = [0, 0], sizes = [8, 128], strides = [1, 1]} : vector<8x512xf32> to vector<8x128xf32>
    %52 = arith.negf %51 : vector<8x128xf32>
    %53 = math.exp %52 : vector<8x128xf32>
    %cst_25 = arith.constant 1.000000e+00 : f32
    %54 = vector.broadcast %cst_25 : f32 to vector<8x128xf32>
    %55 = arith.addf %54, %53 : vector<8x128xf32>
    %56 = arith.divf %54, %55 : vector<8x128xf32>
    %57 = vector.extract_strided_slice %50 {offsets = [0, 128], sizes = [8, 128], strides = [1, 1]} : vector<8x512xf32> to vector<8x128xf32>
    %58 = arith.negf %57 : vector<8x128xf32>
    %59 = math.exp %58 : vector<8x128xf32>
    %cst_26 = arith.constant 1.000000e+00 : f32
    %60 = vector.broadcast %cst_26 : f32 to vector<8x128xf32>
    %61 = arith.addf %60, %59 : vector<8x128xf32>
    %62 = arith.divf %60, %61 : vector<8x128xf32>
    %63 = vector.extract_strided_slice %50 {offsets = [0, 256], sizes = [8, 128], strides = [1, 1]} : vector<8x512xf32> to vector<8x128xf32>
    %64 = math.tanh %63 : vector<8x128xf32>
    %65 = vector.extract_strided_slice %50 {offsets = [0, 384], sizes = [8, 128], strides = [1, 1]} : vector<8x512xf32> to vector<8x128xf32>
    %66 = arith.negf %65 : vector<8x128xf32>
    %67 = math.exp %66 : vector<8x128xf32>
    %cst_27 = arith.constant 1.000000e+00 : f32
    %68 = vector.broadcast %cst_27 : f32 to vector<8x128xf32>
    %69 = arith.addf %68, %67 : vector<8x128xf32>
    %70 = arith.divf %68, %69 : vector<8x128xf32>
    %71 = arith.mulf %62, %41 : vector<8x128xf32>
    %72 = arith.mulf %56, %64 : vector<8x128xf32>
    %73 = arith.addf %71, %72 : vector<8x128xf32>
    %74 = math.tanh %73 : vector<8x128xf32>
    %75 = arith.mulf %70, %74 : vector<8x128xf32>
    %c2_i32 = arith.constant 2 : i32
    %c8_i32_28 = arith.constant 8 : i32
    %76 = arith.muli %c2_i32, %c8_i32_28 : i32
    %77 = tpu.assume_multiple %76, 8 : i32
    %78 = arith.index_cast %77 : i32 to index
    %c0_29 = arith.constant 0 : index
    %79 = vector.load %arg8[%78, %c0_29] : memref<64x512xf32, #tpu.memory_space<vmem>>, vector<8x512xf32>
    %c0_30 = arith.constant 0 : index
    %c0_31 = arith.constant 0 : index
    %80 = vector.load %arg3[%c0_30, %c0_31] : memref<128x512xf32, #tpu.memory_space<vmem>>, vector<128x512xf32>
    %cst_32 = arith.constant dense<0.000000e+00> : vector<8x512xf32>
    %81 = tpu.matmul %75, %80, %cst_32 {dimension_numbers = #tpu.dot_dimension_numbers<[1], [0], [0], [1], [0, 0, 1, 1], [], []>} : vector<8x128xf32>, vector<128x512xf32>, vector<8x512xf32> -> vector<8x512xf32>
    %82 = arith.addf %79, %81 : vector<8x512xf32>
    %83 = vector.extract_strided_slice %82 {offsets = [0, 0], sizes = [8, 128], strides = [1, 1]} : vector<8x512xf32> to vector<8x128xf32>
    %84 = arith.negf %83 : vector<8x128xf32>
    %85 = math.exp %84 : vector<8x128xf32>
    %cst_33 = arith.constant 1.000000e+00 : f32
    %86 = vector.broadcast %cst_33 : f32 to vector<8x128xf32>
    %87 = arith.addf %86, %85 : vector<8x128xf32>
    %88 = arith.divf %86, %87 : vector<8x128xf32>
    %89 = vector.extract_strided_slice %82 {offsets = [0, 128], sizes = [8, 128], strides = [1, 1]} : vector<8x512xf32> to vector<8x128xf32>
    %90 = arith.negf %89 : vector<8x128xf32>
    %91 = math.exp %90 : vector<8x128xf32>
    %cst_34 = arith.constant 1.000000e+00 : f32
    %92 = vector.broadcast %cst_34 : f32 to vector<8x128xf32>
    %93 = arith.addf %92, %91 : vector<8x128xf32>
    %94 = arith.divf %92, %93 : vector<8x128xf32>
    %95 = vector.extract_strided_slice %82 {offsets = [0, 256], sizes = [8, 128], strides = [1, 1]} : vector<8x512xf32> to vector<8x128xf32>
    %96 = math.tanh %95 : vector<8x128xf32>
    %97 = vector.extract_strided_slice %82 {offsets = [0, 384], sizes = [8, 128], strides = [1, 1]} : vector<8x512xf32> to vector<8x128xf32>
    %98 = arith.negf %97 : vector<8x128xf32>
    %99 = math.exp %98 : vector<8x128xf32>
    %cst_35 = arith.constant 1.000000e+00 : f32
    %100 = vector.broadcast %cst_35 : f32 to vector<8x128xf32>
    %101 = arith.addf %100, %99 : vector<8x128xf32>
    %102 = arith.divf %100, %101 : vector<8x128xf32>
    %103 = arith.mulf %94, %73 : vector<8x128xf32>
    %104 = arith.mulf %88, %96 : vector<8x128xf32>
    %105 = arith.addf %103, %104 : vector<8x128xf32>
    %106 = math.tanh %105 : vector<8x128xf32>
    %107 = arith.mulf %102, %106 : vector<8x128xf32>
    %c3_i32 = arith.constant 3 : i32
    %c8_i32_36 = arith.constant 8 : i32
    %108 = arith.muli %c3_i32, %c8_i32_36 : i32
    %109 = tpu.assume_multiple %108, 8 : i32
    %110 = arith.index_cast %109 : i32 to index
    %c0_37 = arith.constant 0 : index
    %111 = vector.load %arg8[%110, %c0_37] : memref<64x512xf32, #tpu.memory_space<vmem>>, vector<8x512xf32>
    %c0_38 = arith.constant 0 : index
    %c0_39 = arith.constant 0 : index
    %112 = vector.load %arg3[%c0_38, %c0_39] : memref<128x512xf32, #tpu.memory_space<vmem>>, vector<128x512xf32>
    %cst_40 = arith.constant dense<0.000000e+00> : vector<8x512xf32>
    %113 = tpu.matmul %107, %112, %cst_40 {dimension_numbers = #tpu.dot_dimension_numbers<[1], [0], [0], [1], [0, 0, 1, 1], [], []>} : vector<8x128xf32>, vector<128x512xf32>, vector<8x512xf32> -> vector<8x512xf32>
    %114 = arith.addf %111, %113 : vector<8x512xf32>
    %115 = vector.extract_strided_slice %114 {offsets = [0, 0], sizes = [8, 128], strides = [1, 1]} : vector<8x512xf32> to vector<8x128xf32>
    %116 = arith.negf %115 : vector<8x128xf32>
    %117 = math.exp %116 : vector<8x128xf32>
    %cst_41 = arith.constant 1.000000e+00 : f32
    %118 = vector.broadcast %cst_41 : f32 to vector<8x128xf32>
    %119 = arith.addf %118, %117 : vector<8x128xf32>
    %120 = arith.divf %118, %119 : vector<8x128xf32>
    %121 = vector.extract_strided_slice %114 {offsets = [0, 128], sizes = [8, 128], strides = [1, 1]} : vector<8x512xf32> to vector<8x128xf32>
    %122 = arith.negf %121 : vector<8x128xf32>
    %123 = math.exp %122 : vector<8x128xf32>
    %cst_42 = arith.constant 1.000000e+00 : f32
    %124 = vector.broadcast %cst_42 : f32 to vector<8x128xf32>
    %125 = arith.addf %124, %123 : vector<8x128xf32>
    %126 = arith.divf %124, %125 : vector<8x128xf32>
    %127 = vector.extract_strided_slice %114 {offsets = [0, 256], sizes = [8, 128], strides = [1, 1]} : vector<8x512xf32> to vector<8x128xf32>
    %128 = math.tanh %127 : vector<8x128xf32>
    %129 = vector.extract_strided_slice %114 {offsets = [0, 384], sizes = [8, 128], strides = [1, 1]} : vector<8x512xf32> to vector<8x128xf32>
    %130 = arith.negf %129 : vector<8x128xf32>
    %131 = math.exp %130 : vector<8x128xf32>
    %cst_43 = arith.constant 1.000000e+00 : f32
    %132 = vector.broadcast %cst_43 : f32 to vector<8x128xf32>
    %133 = arith.addf %132, %131 : vector<8x128xf32>
    %134 = arith.divf %132, %133 : vector<8x128xf32>
    %135 = arith.mulf %126, %105 : vector<8x128xf32>
    %136 = arith.mulf %120, %128 : vector<8x128xf32>
    %137 = arith.addf %135, %136 : vector<8x128xf32>
    %138 = math.tanh %137 : vector<8x128xf32>
    %139 = arith.mulf %134, %138 : vector<8x128xf32>
    %c4_i32 = arith.constant 4 : i32
    %c8_i32_44 = arith.constant 8 : i32
    %140 = arith.muli %c4_i32, %c8_i32_44 : i32
    %141 = tpu.assume_multiple %140, 8 : i32
    %142 = arith.index_cast %141 : i32 to index
    %c0_45 = arith.constant 0 : index
    %143 = vector.load %arg8[%142, %c0_45] : memref<64x512xf32, #tpu.memory_space<vmem>>, vector<8x512xf32>
    %c0_46 = arith.constant 0 : index
    %c0_47 = arith.constant 0 : index
    %144 = vector.load %arg3[%c0_46, %c0_47] : memref<128x512xf32, #tpu.memory_space<vmem>>, vector<128x512xf32>
    %cst_48 = arith.constant dense<0.000000e+00> : vector<8x512xf32>
    %145 = tpu.matmul %139, %144, %cst_48 {dimension_numbers = #tpu.dot_dimension_numbers<[1], [0], [0], [1], [0, 0, 1, 1], [], []>} : vector<8x128xf32>, vector<128x512xf32>, vector<8x512xf32> -> vector<8x512xf32>
    %146 = arith.addf %143, %145 : vector<8x512xf32>
    %147 = vector.extract_strided_slice %146 {offsets = [0, 0], sizes = [8, 128], strides = [1, 1]} : vector<8x512xf32> to vector<8x128xf32>
    %148 = arith.negf %147 : vector<8x128xf32>
    %149 = math.exp %148 : vector<8x128xf32>
    %cst_49 = arith.constant 1.000000e+00 : f32
    %150 = vector.broadcast %cst_49 : f32 to vector<8x128xf32>
    %151 = arith.addf %150, %149 : vector<8x128xf32>
    %152 = arith.divf %150, %151 : vector<8x128xf32>
    %153 = vector.extract_strided_slice %146 {offsets = [0, 128], sizes = [8, 128], strides = [1, 1]} : vector<8x512xf32> to vector<8x128xf32>
    %154 = arith.negf %153 : vector<8x128xf32>
    %155 = math.exp %154 : vector<8x128xf32>
    %cst_50 = arith.constant 1.000000e+00 : f32
    %156 = vector.broadcast %cst_50 : f32 to vector<8x128xf32>
    %157 = arith.addf %156, %155 : vector<8x128xf32>
    %158 = arith.divf %156, %157 : vector<8x128xf32>
    %159 = vector.extract_strided_slice %146 {offsets = [0, 256], sizes = [8, 128], strides = [1, 1]} : vector<8x512xf32> to vector<8x128xf32>
    %160 = math.tanh %159 : vector<8x128xf32>
    %161 = vector.extract_strided_slice %146 {offsets = [0, 384], sizes = [8, 128], strides = [1, 1]} : vector<8x512xf32> to vector<8x128xf32>
    %162 = arith.negf %161 : vector<8x128xf32>
    %163 = math.exp %162 : vector<8x128xf32>
    %cst_51 = arith.constant 1.000000e+00 : f32
    %164 = vector.broadcast %cst_51 : f32 to vector<8x128xf32>
    %165 = arith.addf %164, %163 : vector<8x128xf32>
    %166 = arith.divf %164, %165 : vector<8x128xf32>
    %167 = arith.mulf %158, %137 : vector<8x128xf32>
    %168 = arith.mulf %152, %160 : vector<8x128xf32>
    %169 = arith.addf %167, %168 : vector<8x128xf32>
    %170 = math.tanh %169 : vector<8x128xf32>
    %171 = arith.mulf %166, %170 : vector<8x128xf32>
    %c5_i32 = arith.constant 5 : i32
    %c8_i32_52 = arith.constant 8 : i32
    %172 = arith.muli %c5_i32, %c8_i32_52 : i32
    %173 = tpu.assume_multiple %172, 8 : i32
    %174 = arith.index_cast %173 : i32 to index
    %c0_53 = arith.constant 0 : index
    %175 = vector.load %arg8[%174, %c0_53] : memref<64x512xf32, #tpu.memory_space<vmem>>, vector<8x512xf32>
    %c0_54 = arith.constant 0 : index
    %c0_55 = arith.constant 0 : index
    %176 = vector.load %arg3[%c0_54, %c0_55] : memref<128x512xf32, #tpu.memory_space<vmem>>, vector<128x512xf32>
    %cst_56 = arith.constant dense<0.000000e+00> : vector<8x512xf32>
    %177 = tpu.matmul %171, %176, %cst_56 {dimension_numbers = #tpu.dot_dimension_numbers<[1], [0], [0], [1], [0, 0, 1, 1], [], []>} : vector<8x128xf32>, vector<128x512xf32>, vector<8x512xf32> -> vector<8x512xf32>
    %178 = arith.addf %175, %177 : vector<8x512xf32>
    %179 = vector.extract_strided_slice %178 {offsets = [0, 0], sizes = [8, 128], strides = [1, 1]} : vector<8x512xf32> to vector<8x128xf32>
    %180 = arith.negf %179 : vector<8x128xf32>
    %181 = math.exp %180 : vector<8x128xf32>
    %cst_57 = arith.constant 1.000000e+00 : f32
    %182 = vector.broadcast %cst_57 : f32 to vector<8x128xf32>
    %183 = arith.addf %182, %181 : vector<8x128xf32>
    %184 = arith.divf %182, %183 : vector<8x128xf32>
    %185 = vector.extract_strided_slice %178 {offsets = [0, 128], sizes = [8, 128], strides = [1, 1]} : vector<8x512xf32> to vector<8x128xf32>
    %186 = arith.negf %185 : vector<8x128xf32>
    %187 = math.exp %186 : vector<8x128xf32>
    %cst_58 = arith.constant 1.000000e+00 : f32
    %188 = vector.broadcast %cst_58 : f32 to vector<8x128xf32>
    %189 = arith.addf %188, %187 : vector<8x128xf32>
    %190 = arith.divf %188, %189 : vector<8x128xf32>
    %191 = vector.extract_strided_slice %178 {offsets = [0, 256], sizes = [8, 128], strides = [1, 1]} : vector<8x512xf32> to vector<8x128xf32>
    %192 = math.tanh %191 : vector<8x128xf32>
    %193 = vector.extract_strided_slice %178 {offsets = [0, 384], sizes = [8, 128], strides = [1, 1]} : vector<8x512xf32> to vector<8x128xf32>
    %194 = arith.negf %193 : vector<8x128xf32>
    %195 = math.exp %194 : vector<8x128xf32>
    %cst_59 = arith.constant 1.000000e+00 : f32
    %196 = vector.broadcast %cst_59 : f32 to vector<8x128xf32>
    %197 = arith.addf %196, %195 : vector<8x128xf32>
    %198 = arith.divf %196, %197 : vector<8x128xf32>
    %199 = arith.mulf %190, %169 : vector<8x128xf32>
    %200 = arith.mulf %184, %192 : vector<8x128xf32>
    %201 = arith.addf %199, %200 : vector<8x128xf32>
    %202 = math.tanh %201 : vector<8x128xf32>
    %203 = arith.mulf %198, %202 : vector<8x128xf32>
    %c6_i32 = arith.constant 6 : i32
    %c8_i32_60 = arith.constant 8 : i32
    %204 = arith.muli %c6_i32, %c8_i32_60 : i32
    %205 = tpu.assume_multiple %204, 8 : i32
    %206 = arith.index_cast %205 : i32 to index
    %c0_61 = arith.constant 0 : index
    %207 = vector.load %arg8[%206, %c0_61] : memref<64x512xf32, #tpu.memory_space<vmem>>, vector<8x512xf32>
    %c0_62 = arith.constant 0 : index
    %c0_63 = arith.constant 0 : index
    %208 = vector.load %arg3[%c0_62, %c0_63] : memref<128x512xf32, #tpu.memory_space<vmem>>, vector<128x512xf32>
    %cst_64 = arith.constant dense<0.000000e+00> : vector<8x512xf32>
    %209 = tpu.matmul %203, %208, %cst_64 {dimension_numbers = #tpu.dot_dimension_numbers<[1], [0], [0], [1], [0, 0, 1, 1], [], []>} : vector<8x128xf32>, vector<128x512xf32>, vector<8x512xf32> -> vector<8x512xf32>
    %210 = arith.addf %207, %209 : vector<8x512xf32>
    %211 = vector.extract_strided_slice %210 {offsets = [0, 0], sizes = [8, 128], strides = [1, 1]} : vector<8x512xf32> to vector<8x128xf32>
    %212 = arith.negf %211 : vector<8x128xf32>
    %213 = math.exp %212 : vector<8x128xf32>
    %cst_65 = arith.constant 1.000000e+00 : f32
    %214 = vector.broadcast %cst_65 : f32 to vector<8x128xf32>
    %215 = arith.addf %214, %213 : vector<8x128xf32>
    %216 = arith.divf %214, %215 : vector<8x128xf32>
    %217 = vector.extract_strided_slice %210 {offsets = [0, 128], sizes = [8, 128], strides = [1, 1]} : vector<8x512xf32> to vector<8x128xf32>
    %218 = arith.negf %217 : vector<8x128xf32>
    %219 = math.exp %218 : vector<8x128xf32>
    %cst_66 = arith.constant 1.000000e+00 : f32
    %220 = vector.broadcast %cst_66 : f32 to vector<8x128xf32>
    %221 = arith.addf %220, %219 : vector<8x128xf32>
    %222 = arith.divf %220, %221 : vector<8x128xf32>
    %223 = vector.extract_strided_slice %210 {offsets = [0, 256], sizes = [8, 128], strides = [1, 1]} : vector<8x512xf32> to vector<8x128xf32>
    %224 = math.tanh %223 : vector<8x128xf32>
    %225 = vector.extract_strided_slice %210 {offsets = [0, 384], sizes = [8, 128], strides = [1, 1]} : vector<8x512xf32> to vector<8x128xf32>
    %226 = arith.negf %225 : vector<8x128xf32>
    %227 = math.exp %226 : vector<8x128xf32>
    %cst_67 = arith.constant 1.000000e+00 : f32
    %228 = vector.broadcast %cst_67 : f32 to vector<8x128xf32>
    %229 = arith.addf %228, %227 : vector<8x128xf32>
    %230 = arith.divf %228, %229 : vector<8x128xf32>
    %231 = arith.mulf %222, %201 : vector<8x128xf32>
    %232 = arith.mulf %216, %224 : vector<8x128xf32>
    %233 = arith.addf %231, %232 : vector<8x128xf32>
    %234 = math.tanh %233 : vector<8x128xf32>
    %235 = arith.mulf %230, %234 : vector<8x128xf32>
    %c7_i32 = arith.constant 7 : i32
    %c8_i32_68 = arith.constant 8 : i32
    %236 = arith.muli %c7_i32, %c8_i32_68 : i32
    %237 = tpu.assume_multiple %236, 8 : i32
    %238 = arith.index_cast %237 : i32 to index
    %c0_69 = arith.constant 0 : index
    %239 = vector.load %arg8[%238, %c0_69] : memref<64x512xf32, #tpu.memory_space<vmem>>, vector<8x512xf32>
    %c0_70 = arith.constant 0 : index
    %c0_71 = arith.constant 0 : index
    %240 = vector.load %arg3[%c0_70, %c0_71] : memref<128x512xf32, #tpu.memory_space<vmem>>, vector<128x512xf32>
    %cst_72 = arith.constant dense<0.000000e+00> : vector<8x512xf32>
    %241 = tpu.matmul %235, %240, %cst_72 {dimension_numbers = #tpu.dot_dimension_numbers<[1], [0], [0], [1], [0, 0, 1, 1], [], []>} : vector<8x128xf32>, vector<128x512xf32>, vector<8x512xf32> -> vector<8x512xf32>
    %242 = arith.addf %239, %241 : vector<8x512xf32>
    %243 = vector.extract_strided_slice %242 {offsets = [0, 0], sizes = [8, 128], strides = [1, 1]} : vector<8x512xf32> to vector<8x128xf32>
    %244 = arith.negf %243 : vector<8x128xf32>
    %245 = math.exp %244 : vector<8x128xf32>
    %cst_73 = arith.constant 1.000000e+00 : f32
    %246 = vector.broadcast %cst_73 : f32 to vector<8x128xf32>
    %247 = arith.addf %246, %245 : vector<8x128xf32>
    %248 = arith.divf %246, %247 : vector<8x128xf32>
    %249 = vector.extract_strided_slice %242 {offsets = [0, 128], sizes = [8, 128], strides = [1, 1]} : vector<8x512xf32> to vector<8x128xf32>
    %250 = arith.negf %249 : vector<8x128xf32>
    %251 = math.exp %250 : vector<8x128xf32>
    %cst_74 = arith.constant 1.000000e+00 : f32
    %252 = vector.broadcast %cst_74 : f32 to vector<8x128xf32>
    %253 = arith.addf %252, %251 : vector<8x128xf32>
    %254 = arith.divf %252, %253 : vector<8x128xf32>
    %255 = vector.extract_strided_slice %242 {offsets = [0, 256], sizes = [8, 128], strides = [1, 1]} : vector<8x512xf32> to vector<8x128xf32>
    %256 = math.tanh %255 : vector<8x128xf32>
    %257 = vector.extract_strided_slice %242 {offsets = [0, 384], sizes = [8, 128], strides = [1, 1]} : vector<8x512xf32> to vector<8x128xf32>
    %258 = arith.negf %257 : vector<8x128xf32>
    %259 = math.exp %258 : vector<8x128xf32>
    %cst_75 = arith.constant 1.000000e+00 : f32
    %260 = vector.broadcast %cst_75 : f32 to vector<8x128xf32>
    %261 = arith.addf %260, %259 : vector<8x128xf32>
    %262 = arith.divf %260, %261 : vector<8x128xf32>
    %263 = arith.mulf %254, %233 : vector<8x128xf32>
    %264 = arith.mulf %248, %256 : vector<8x128xf32>
    %265 = arith.addf %263, %264 : vector<8x128xf32>
    %266 = math.tanh %265 : vector<8x128xf32>
    %267 = arith.mulf %262, %266 : vector<8x128xf32>
    %c8_i32_76 = arith.constant 8 : i32
    %c0_77 = arith.constant 0 : index
    %c0_78 = arith.constant 0 : index
    %268 = vector.load %arg9[%c0_77, %c0_78] : memref<8x128xf32, #tpu.memory_space<vmem>>, vector<8x128xf32>
    tpu.vector_store %arg9[%c0_77, %c0_78], %267 {strides = array<i32>} : memref<8x128xf32, #tpu.memory_space<vmem>>, vector<8x128xf32>,
    %c0_79 = arith.constant 0 : index
    %c0_80 = arith.constant 0 : index
    %269 = vector.load %arg10[%c0_79, %c0_80] : memref<8x128xf32, #tpu.memory_space<vmem>>, vector<8x128xf32>
    tpu.vector_store %arg10[%c0_79, %c0_80], %265 {strides = array<i32>} : memref<8x128xf32, #tpu.memory_space<vmem>>, vector<8x128xf32>,
    %c0_i32_81 = arith.constant 0 : i32
    %270 = arith.cmpi eq, %arg0, %c0_i32_81 : i32
    %271 = arith.extui %270 : i1 to i32
    %c0_i32_82 = arith.constant 0 : i32
    %272 = arith.cmpi ne, %271, %c0_i32_82 : i32
    scf.if %272 {
      %c0_83 = arith.constant 0 : index
      %c0_84 = arith.constant 0 : index
      %273 = vector.load %arg5[%c0_83, %c0_84] : memref<128x128xf32, #tpu.memory_space<vmem>>, vector<128x128xf32>
      %cst_85 = arith.constant dense<0.000000e+00> : vector<8x128xf32>
      %274 = tpu.matmul %267, %273, %cst_85 {dimension_numbers = #tpu.dot_dimension_numbers<[1], [0], [0], [1], [0, 0, 1, 1], [], []>} : vector<8x128xf32>, vector<128x128xf32>, vector<8x128xf32> -> vector<8x128xf32>
      %c0_86 = arith.constant 0 : index
      %c0_87 = arith.constant 0 : index
      %275 = vector.load %arg6[%c0_86, %c0_87] : memref<1x128xf32, #tpu.memory_space<vmem>>, vector<1x128xf32>
      %276 = vector.broadcast %275 : vector<1x128xf32> to vector<8x128xf32>
      %277 = arith.addf %274, %276 : vector<8x128xf32>
      %c0_88 = arith.constant 0 : index
      %c0_89 = arith.constant 0 : index
      %278 = vector.load %arg7[%c0_88, %c0_89] : memref<8x128xf32, #tpu.memory_space<vmem>>, vector<8x128xf32>
      tpu.vector_store %arg7[%c0_88, %c0_89], %277 {strides = array<i32>} : memref<8x128xf32, #tpu.memory_space<vmem>>, vector<8x128xf32>,
    } else {
    }
    return
  }
  func.func @transform_0(%arg0: i32) -> (i32, i32) {
    %c0_i32 = arith.constant 0 : i32
    %c0_i32_0 = arith.constant 0 : i32
    return %arg0, %c0_i32 : i32, i32
  }
  func.func @transform_1(%arg0: i32) -> (i32, i32) {
    %c0_i32 = arith.constant 0 : i32
    %c0_i32_0 = arith.constant 0 : i32
    %c0_i32_1 = arith.constant 0 : i32
    return %c0_i32, %c0_i32_0 : i32, i32
  }
  func.func @transform_2(%arg0: i32) -> (i32, i32) {
    %c0_i32 = arith.constant 0 : i32
    %c0_i32_0 = arith.constant 0 : i32
    %c0_i32_1 = arith.constant 0 : i32
    return %c0_i32, %c0_i32_0 : i32, i32
  }
  func.func @transform_3(%arg0: i32) -> (i32, i32) {
    %c0_i32 = arith.constant 0 : i32
    %c0_i32_0 = arith.constant 0 : i32
    %c0_i32_1 = arith.constant 0 : i32
    return %c0_i32, %c0_i32_0 : i32, i32
  }
  func.func @transform_4(%arg0: i32) -> (i32, i32) {
    %c0_i32 = arith.constant 0 : i32
    %c0_i32_0 = arith.constant 0 : i32
    %c0_i32_1 = arith.constant 0 : i32
    return %c0_i32, %c0_i32_0 : i32, i32
  }
  func.func @transform_5(%arg0: i32) -> (i32, i32) {
    %c0_i32 = arith.constant 0 : i32
    %c0_i32_0 = arith.constant 0 : i32
    %c0_i32_1 = arith.constant 0 : i32
    return %c0_i32, %c0_i32_0 : i32, i32
  }
  func.func @transform_6(%arg0: i32) -> (i32, i32) {
    %c0_i32 = arith.constant 0 : i32
    %c0_i32_0 = arith.constant 0 : i32
    %c0_i32_1 = arith.constant 0 : i32
    return %c0_i32, %c0_i32_0 : i32, i32
  }
}

</mosaic_0001>

<llo_original>
// kernel: tpu_custom_call.1
$region0: #{tpu_custom_call.1}
  #allocation0 [shape = 'u32[]', space=smem, size = 0x4, offset = 0x4, fixed_abs, tag = 'smem constant byte address 0x4 - core index']
  #allocation1 [shape = 'u32[144,128]{1,0:T(1,128)}', space=vmem, size = 0x12000, scoped, tag = 'internal scratch']
  #allocation2 [shape = 'f32[64,512]{1,0:T(8,128)}', space=vmem, size = 0x20000, scoped, tag = 'scratch operand']
  #allocation3 [shape = 'f32[8,128]{1,0:T(8,128)}', space=vmem, size = 0x1000, scoped, tag = 'scratch operand']
  #allocation4 [shape = 'f32[8,128]{1,0:T(8,128)}', space=vmem, size = 0x1000, scoped, tag = 'scratch operand']
  %s0 = inlined_call_operand.vmem [shape: f32[64,4], index: 0, kind: input, shape index: {}]
  %s1 = inlined_call_operand.vmem [shape: f32[4,512], index: 1, kind: input, shape index: {}]
  %s2 = inlined_call_operand.hbm [shape: f32[128,512], index: 2, kind: input, shape index: {}]
  %s3 = inlined_call_operand.vmem [shape: f32[1,512], index: 3, kind: input, shape index: {}]
  %s4 = inlined_call_operand.hbm [shape: f32[128,128], index: 4, kind: input, shape index: {}]
  %s5 = inlined_call_operand.vmem [shape: f32[1,128], index: 5, kind: input, shape index: {}]
  %s6 = inlined_call_operand.hbm [shape: f32[8,128], index: 6, kind: output, shape index: {}]
  %s7 = sld [smem:[#allocation0]]
  $region50: #{tpu_custom_call.1} parent=0
    _
  %s9 = ssub.s32 1, %s7
  %s10 = scalar_select 0, %s9, %s7
  $region1: #{tpu_custom_call.1} parent=0
    #allocation5 [shape = 'u8[262144]{0}', space=vmem, size = 0x40000, scoped, tag = 'input window, operand 2, single buffered']
    #allocation6 [shape = 's32[1]{0}', space=sflag, size = 0x4, scoped, tag = 'scoped memory for tpu_custom_call.1']
    #allocation7 [shape = 's32[1]{0}', space=sflag, size = 0x4, scoped, tag = 'scoped memory for tpu_custom_call.1']
    #allocation8 [shape = 'u8[65536]{0}', space=vmem, size = 0x10000, scoped, tag = 'input window, operand 4, single buffered']
    #allocation9 [shape = 's32[1]{0}', space=sflag, size = 0x4, scoped, tag = 'scoped memory for tpu_custom_call.1']
    #allocation10 [shape = 'u8[4096]{0}', space=vmem, size = 0x1000, scoped, tag = 'output window, operand 0, single buffered']
    %11 = vsyncpa [#allocation6], 0
    %12 = vsyncpa [#allocation9], 0
    %13 = vsyncpa [#allocation7], 0
    // Predicated region
    $region2: #{tpu_custom_call.1} parent=1 // pred_check
      _
    $region3: #{tpu_custom_call.1} parent=1 // pred_check_branch
      %15 = sbr.rel (0) target = $region5
    $region4: #{tpu_custom_call.1} parent=1 // pred_region
      _
    $region5: #{tpu_custom_call.1} parent=1 // pred_fallthru
      _
    // Predicated region
    $region6: #{tpu_custom_call.1} parent=1 // pred_check
      _
    $region7: #{tpu_custom_call.1} parent=1 // pred_check_branch
      %17 = sbr.rel (0) target = $region9
    $region8: #{tpu_custom_call.1} parent=1 // pred_region
      _
    $region9: #{tpu_custom_call.1} parent=1 // pred_fallthru
      _
    // Predicated region
    $region10: #{tpu_custom_call.1} parent=1 // pred_check
      _
    $region11: #{tpu_custom_call.1} parent=1 // pred_check_branch
      %19 = sbr.rel (0) target = $region13
    $region12: #{tpu_custom_call.1} parent=1 // pred_region
      %s21 = ssub.s32 8192, 8192
      %22 = vsyncadd [#allocation6], %s21
      %s23 = sshll.u32 [#allocation5], 4
      %s24 = int_to_ptr.vmem [resolvable:$true] %s23
      %29 = dma.hbm_to_vmem [thread:$0]  %s2, 8192, %s24, [#allocation6], 512, 512, 32
    $region13: #{tpu_custom_call.1} parent=1 // pred_fallthru
      _
    // Predicated region
    $region14: #{tpu_custom_call.1} parent=1 // pred_check
      _
    $region15: #{tpu_custom_call.1} parent=1 // pred_check_branch
      %31 = sbr.rel (0) target = $region17
    $region16: #{tpu_custom_call.1} parent=1 // pred_region
      _
    $region17: #{tpu_custom_call.1} parent=1 // pred_fallthru
      _
    // Predicated region
    $region18: #{tpu_custom_call.1} parent=1 // pred_check
      _
    $region19: #{tpu_custom_call.1} parent=1 // pred_check_branch
      %33 = sbr.rel (0) target = $region21
    $region20: #{tpu_custom_call.1} parent=1 // pred_region
      %s35 = ssub.s32 2048, 2048
      %36 = vsyncadd [#allocation9], %s35
      %s37 = sshll.u32 [#allocation8], 4
      %s38 = int_to_ptr.vmem [resolvable:$true] %s37
      %43 = dma.hbm_to_vmem [thread:$0]  %s4, 2048, %s38, [#allocation9], 128, 128, 8
    $region21: #{tpu_custom_call.1} parent=1 // pred_fallthru
      _
    // Predicated region
    $region22: #{tpu_custom_call.1} parent=1 // pred_check
      _
    $region23: #{tpu_custom_call.1} parent=1 // pred_check_branch
      %45 = sbr.rel (0) target = $region25
    $region24: #{tpu_custom_call.1} parent=1 // pred_region
      _
    $region25: #{tpu_custom_call.1} parent=1 // pred_fallthru
      _
    // Predicated region
    $region26: #{tpu_custom_call.1} parent=1 // pred_check
      _
    $region27: #{tpu_custom_call.1} parent=1 // pred_check_branch
      %47 = sbr.rel (0) target = $region29
    $region28: #{tpu_custom_call.1} parent=1 // pred_region
      %48 = dma.done [#allocation6], 8192
    $region29: #{tpu_custom_call.1} parent=1 // pred_fallthru
      _
    // Predicated region
    $region30: #{tpu_custom_call.1} parent=1 // pred_check
      _
    $region31: #{tpu_custom_call.1} parent=1 // pred_check_branch
      %50 = sbr.rel (0) target = $region33
    $region32: #{tpu_custom_call.1} parent=1 // pred_region
      %51 = dma.done [#allocation9], 2048
    $region33: #{tpu_custom_call.1} parent=1 // pred_fallthru
      _
    %p52 = scmp.eq.s32.totalorder 0, 0
    // Predicated region
    $region34: #{tpu_custom_call.1} parent=1 // pred_check
      %p53 = pneg %p52
    $region35: #{tpu_custom_call.1} parent=1 // pred_check_branch
      %55 = sbr.rel (%p53) target = $region37
    $region36: #{tpu_custom_call.1} parent=1 // pred_region
      %56 = vst [vmem:[#allocation3] sm:$0xff] 0.0
      %57 = vst [vmem:[#allocation4] sm:$0xff] 0.0
    $region37: #{tpu_custom_call.1} parent=1 // pred_fallthru
      _
    %v58 = vld [vmem:[%s0] sm:$0xff]
    %v59 = vld [vmem:[%s0 + $0x8] sm:$0xff]
    %v60 = vld [vmem:[%s0 + $0x10] sm:$0xff]
    %v61 = vld [vmem:[%s0 + $0x18] sm:$0xff]
    %v62 = vld [vmem:[%s0 + $0x20] sm:$0xff]
    %v63 = vld [vmem:[%s0 + $0x28] sm:$0xff]
    %v64 = vld [vmem:[%s0 + $0x30] sm:$0xff]
    %v65 = vld [vmem:[%s0 + $0x38] sm:$0xff]
    %v66 = vld [vmem:[%s1] sm:$0xff]
    %v67 = vld [vmem:[%s1 + $0x8] sm:$0xff]
    %v68 = vld [vmem:[%s3] sm:$0xf]
    %v70 = vlaneseq
    %v71 = vshrl.u32 %v70, 7
    %v72 = vsub.s32 0, %v71
    %v73 = vrot.slane %v68, %v72
    %v74 = vlaneseq
    %v75 = vshrl.u32 %v74, 7
    %v76 = vsub.s32 1, %v75
    %v77 = vrot.slane %v68, %v76
    %v78 = vlaneseq
    %v79 = vshrl.u32 %v78, 7
    %v80 = vsub.s32 2, %v79
    %v81 = vrot.slane %v68, %v80
    %v82 = vlaneseq
    %v83 = vshrl.u32 %v82, 7
    %v84 = vsub.s32 3, %v83
    %v85 = vrot.slane %v68, %v84
    %v92 = vcombine.high %v66, %v66
    %v93 = vcombine.high %v67, %v67
    %vm94 = vcmask 31744
    %v96 = vsel %vm94, %v58, 0
    %v99 = vsel %vm94, %v59, 0
    %v102 = vsel %vm94, %v60, 0
    %v105 = vsel %vm94, %v61, 0
    %v108 = vsel %vm94, %v62, 0
    %v111 = vsel %vm94, %v63, 0
    %v114 = vsel %vm94, %v64, 0
    %v117 = vsel %vm94, %v65, 0
    %vm119 = vcmask 1043456
    %v120 = vsel %vm119, %v66, 0
    %v122 = vsel %vm119, %v92, 0
    %v124 = vsel %vm119, %v67, 0
    %v126 = vsel %vm119, %v93, 0
    %128 = vmatprep.subr.mxu0 %v122
    %129 = vmatpush1.msra.mxu0 %v120
    %130 = vmatprep.subr.mxu0 0.0
    %131 = vmatpush1.msra.mxu0 0.0
    %132 = vmatprep.subr.mxu0 0.0
    %133 = vmatpush1.msra.mxu0 0.0
    %134 = vmatprep.subr.mxu0 0.0
    %135 = vmatpush1.msra.mxu0 0.0
    %136 = vmatprep.subr.mxu0 0.0
    %137 = vmatpush1.msra.mxu0 0.0
    %138 = vmatprep.subr.mxu0 0.0
    %139 = vmatpush1.msra.mxu0 0.0
    %140 = vmatprep.subr.mxu0 0.0
    %141 = vmatpush1.msra.mxu0 0.0
    %142 = vmatprep.subr.mxu0 0.0
    %143 = vmatpush1.msra.mxu0 0.0
    %144 = vmatprep.subr.mxu0 0.0
    %145 = vmatpush1.msra.mxu0 0.0
    %146 = vmatprep.subr.mxu0 0.0
    %147 = vmatpush1.msra.mxu0 0.0
    %148 = vmatprep.subr.mxu0 0.0
    %149 = vmatpush1.msra.mxu0 0.0
    %150 = vmatprep.subr.mxu0 0.0
    %151 = vmatpush1.msra.mxu0 0.0
    %152 = vmatprep.subr.mxu0 0.0
    %153 = vmatpush1.msra.mxu0 0.0
    %154 = vmatprep.subr.mxu0 0.0
    %155 = vmatpush1.msra.mxu0 0.0
    %156 = vmatprep.subr.mxu0 0.0
    %157 = vmatpush1.msra.mxu0 0.0
    %158 = vmatprep.subr.mxu0 0.0
    %159 = vmatpush1.msra.mxu0 0.0
    %160 = vmatprep.subr.mxu0 0.0
    %161 = vmatpush1.msra.mxu0 0.0
    %162 = vmatprep.subr.mxu0 0.0
    %163 = vmatpush1.msra.mxu0 0.0
    %164 = vmatprep.subr.mxu0 0.0
    %165 = vmatpush1.msra.mxu0 0.0
    %166 = vmatprep.subr.mxu0 0.0
    %167 = vmatpush1.msra.mxu0 0.0
    %168 = vmatprep.subr.mxu0 0.0
    %169 = vmatpush1.msra.mxu0 0.0
    %170 = vmatprep.subr.mxu0 0.0
    %171 = vmatpush1.msra.mxu0 0.0
    %172 = vmatprep.subr.mxu0 0.0
    %173 = vmatpush1.msra.mxu0 0.0
    %174 = vmatprep.subr.mxu0 0.0
    %175 = vmatpush1.msra.mxu0 0.0
    %176 = vmatprep.subr.mxu0 0.0
    %177 = vmatpush1.msra.mxu0 0.0
    %178 = vmatprep.subr.mxu0 0.0
    %179 = vmatpush1.msra.mxu0 0.0
    %180 = vmatprep.subr.mxu0 0.0
    %181 = vmatpush1.msra.mxu0 0.0
    %182 = vmatprep.subr.mxu0 0.0
    %183 = vmatpush1.msra.mxu0 0.0
    %184 = vmatprep.subr.mxu0 0.0
    %185 = vmatpush1.msra.mxu0 0.0
    %186 = vmatprep.subr.mxu0 0.0
    %187 = vmatpush1.msra.mxu0 0.0
    %188 = vmatprep.subr.mxu0 0.0
    %189 = vmatpush1.msra.mxu0 0.0
    %190 = vmatprep.subr.mxu0 0.0
    %191 = vmatpush1.msra.mxu0 0.0
    %192 = vmatprep.mubr.f32.mxu0 0.0
    %193 = vmatmul.mubr.f32.gmra.mrb[0].mxu0 %v96
    %v194 = vpop.f32.mrb[0].mxu0
    %v195 = vadd.f32 %v73, %v194
    %v196 = vpop.f32.mrb[0].mxu0
    %v197 = vadd.f32 %v77, %v196
    %198 = vmatprep.mubr.f32.mxu0 0.0
    %199 = vmatmul.mubr.f32.gmra.mrb[0].mxu0 %v99
    %v200 = vpop.f32.mrb[0].mxu0
    %v201 = vadd.f32 %v73, %v200
    %v202 = vpop.f32.mrb[0].mxu0
    %v203 = vadd.f32 %v77, %v202
    %204 = vmatprep.mubr.f32.mxu0 0.0
    %205 = vmatmul.mubr.f32.gmra.mrb[0].mxu0 %v102
    %v206 = vpop.f32.mrb[0].mxu0
    %v207 = vadd.f32 %v73, %v206
    %v208 = vpop.f32.mrb[0].mxu0
    %v209 = vadd.f32 %v77, %v208
    %210 = vmatprep.mubr.f32.mxu0 0.0
    %211 = vmatmul.mubr.f32.gmra.mrb[0].mxu0 %v105
    %v212 = vpop.f32.mrb[0].mxu0
    %v213 = vadd.f32 %v73, %v212
    %v214 = vpop.f32.mrb[0].mxu0
    %v215 = vadd.f32 %v77, %v214
    %216 = vmatprep.mubr.f32.mxu0 0.0
    %217 = vmatmul.mubr.f32.gmra.mrb[0].mxu0 %v108
    %v218 = vpop.f32.mrb[0].mxu0
    %v219 = vadd.f32 %v73, %v218
    %v220 = vpop.f32.mrb[0].mxu0
    %v221 = vadd.f32 %v77, %v220
    %222 = vmatprep.mubr.f32.mxu0 0.0
    %223 = vmatmul.mubr.f32.gmra.mrb[0].mxu0 %v111
    %v224 = vpop.f32.mrb[0].mxu0
    %v225 = vadd.f32 %v73, %v224
    %v226 = vpop.f32.mrb[0].mxu0
    %v227 = vadd.f32 %v77, %v226
    %228 = vmatprep.mubr.f32.mxu0 0.0
    %229 = vmatmul.mubr.f32.gmra.mrb[0].mxu0 %v114
    %v230 = vpop.f32.mrb[0].mxu0
    %v231 = vadd.f32 %v73, %v230
    %v232 = vpop.f32.mrb[0].mxu0
    %v233 = vadd.f32 %v77, %v232
    %234 = vmatprep.mubr.f32.mxu0 0.0
    %235 = vmatmul.mubr.f32.gmra.mrb[0].mxu0 %v117
    %v236 = vpop.f32.mrb[0].mxu0
    %v237 = vadd.f32 %v73, %v236
    %v238 = vpop.f32.mrb[0].mxu0
    %v239 = vadd.f32 %v77, %v238
    %240 = vdwg.mxu0
    %241 = vmatprep.subr.mxu0 %v126
    %242 = vmatpush1.msra.mxu0 %v124
    %243 = vmatprep.subr.mxu0 0.0
    %244 = vmatpush1.msra.mxu0 0.0
    %245 = vmatprep.subr.mxu0 0.0
    %246 = vmatpush1.msra.mxu0 0.0
    %247 = vmatprep.subr.mxu0 0.0
    %248 = vmatpush1.msra.mxu0 0.0
    %249 = vmatprep.subr.mxu0 0.0
    %250 = vmatpush1.msra.mxu0 0.0
    %251 = vmatprep.subr.mxu0 0.0
    %252 = vmatpush1.msra.mxu0 0.0
    %253 = vmatprep.subr.mxu0 0.0
    %254 = vmatpush1.msra.mxu0 0.0
    %255 = vmatprep.subr.mxu0 0.0
    %256 = vmatpush1.msra.mxu0 0.0
    %257 = vmatprep.subr.mxu0 0.0
    %258 = vmatpush1.msra.mxu0 0.0
    %259 = vmatprep.subr.mxu0 0.0
    %260 = vmatpush1.msra.mxu0 0.0
    %261 = vmatprep.subr.mxu0 0.0
    %262 = vmatpush1.msra.mxu0 0.0
    %263 = vmatprep.subr.mxu0 0.0
    %264 = vmatpush1.msra.mxu0 0.0
    %265 = vmatprep.subr.mxu0 0.0
    %266 = vmatpush1.msra.mxu0 0.0
    %267 = vmatprep.subr.mxu0 0.0
    %268 = vmatpush1.msra.mxu0 0.0
    %269 = vmatprep.subr.mxu0 0.0
    %270 = vmatpush1.msra.mxu0 0.0
    %271 = vmatprep.subr.mxu0 0.0
    %272 = vmatpush1.msra.mxu0 0.0
    %273 = vmatprep.subr.mxu0 0.0
    %274 = vmatpush1.msra.mxu0 0.0
    %275 = vmatprep.subr.mxu0 0.0
    %276 = vmatpush1.msra.mxu0 0.0
    %277 = vmatprep.subr.mxu0 0.0
    %278 = vmatpush1.msra.mxu0 0.0
    %279 = vmatprep.subr.mxu0 0.0
    %280 = vmatpush1.msra.mxu0 0.0
    %281 = vmatprep.subr.mxu0 0.0
    %282 = vmatpush1.msra.mxu0 0.0
    %283 = vmatprep.subr.mxu0 0.0
    %284 = vmatpush1.msra.mxu0 0.0
    %285 = vmatprep.subr.mxu0 0.0
    %286 = vmatpush1.msra.mxu0 0.0
    %287 = vmatprep.subr.mxu0 0.0
    %288 = vmatpush1.msra.mxu0 0.0
    %289 = vmatprep.subr.mxu0 0.0
    %290 = vmatpush1.msra.mxu0 0.0
    %291 = vmatprep.subr.mxu0 0.0
    %292 = vmatpush1.msra.mxu0 0.0
    %293 = vmatprep.subr.mxu0 0.0
    %294 = vmatpush1.msra.mxu0 0.0
    %295 = vmatprep.subr.mxu0 0.0
    %296 = vmatpush1.msra.mxu0 0.0
    %297 = vmatprep.subr.mxu0 0.0
    %298 = vmatpush1.msra.mxu0 0.0
    %299 = vmatprep.subr.mxu0 0.0
    %300 = vmatpush1.msra.mxu0 0.0
    %301 = vmatprep.subr.mxu0 0.0
    %302 = vmatpush1.msra.mxu0 0.0
    %303 = vmatprep.subr.mxu0 0.0
    %304 = vmatpush1.msra.mxu0 0.0
    %305 = vmatprep.mubr.f32.mxu0 0.0
    %306 = vmatmul.mubr.f32.gmra.mrb[0].mxu0 %v96
    %v307 = vpop.f32.mrb[0].mxu0
    %v308 = vadd.f32 %v81, %v307
    %v309 = vpop.f32.mrb[0].mxu0
    %v310 = vadd.f32 %v85, %v309
    %311 = vmatprep.mubr.f32.mxu0 0.0
    %312 = vmatmul.mubr.f32.gmra.mrb[0].mxu0 %v99
    %v313 = vpop.f32.mrb[0].mxu0
    %v314 = vadd.f32 %v81, %v313
    %v315 = vpop.f32.mrb[0].mxu0
    %v316 = vadd.f32 %v85, %v315
    %317 = vmatprep.mubr.f32.mxu0 0.0
    %318 = vmatmul.mubr.f32.gmra.mrb[0].mxu0 %v102
    %v319 = vpop.f32.mrb[0].mxu0
    %v320 = vadd.f32 %v81, %v319
    %v321 = vpop.f32.mrb[0].mxu0
    %v322 = vadd.f32 %v85, %v321
    %323 = vmatprep.mubr.f32.mxu0 0.0
    %324 = vmatmul.mubr.f32.gmra.mrb[0].mxu0 %v105
    %v325 = vpop.f32.mrb[0].mxu0
    %v326 = vadd.f32 %v81, %v325
    %v327 = vpop.f32.mrb[0].mxu0
    %v328 = vadd.f32 %v85, %v327
    %329 = vmatprep.mubr.f32.mxu0 0.0
    %330 = vmatmul.mubr.f32.gmra.mrb[0].mxu0 %v108
    %v331 = vpop.f32.mrb[0].mxu0
    %v332 = vadd.f32 %v81, %v331
    %v333 = vpop.f32.mrb[0].mxu0
    %v334 = vadd.f32 %v85, %v333
    %335 = vmatprep.mubr.f32.mxu0 0.0
    %336 = vmatmul.mubr.f32.gmra.mrb[0].mxu0 %v111
    %v337 = vpop.f32.mrb[0].mxu0
    %v338 = vadd.f32 %v81, %v337
    %v339 = vpop.f32.mrb[0].mxu0
    %v340 = vadd.f32 %v85, %v339
    %341 = vmatprep.mubr.f32.mxu0 0.0
    %342 = vmatmul.mubr.f32.gmra.mrb[0].mxu0 %v114
    %v343 = vpop.f32.mrb[0].mxu0
    %v344 = vadd.f32 %v81, %v343
    %v345 = vpop.f32.mrb[0].mxu0
    %v346 = vadd.f32 %v85, %v345
    %347 = vmatprep.mubr.f32.mxu0 0.0
    %348 = vmatmul.mubr.f32.gmra.mrb[0].mxu0 %v117
    %v349 = vpop.f32.mrb[0].mxu0
    %v350 = vadd.f32 %v81, %v349
    %v351 = vpop.f32.mrb[0].mxu0
    %v352 = vadd.f32 %v85, %v351
    %353 = vdwg.mxu0
    %354 = vst [vmem:[#allocation2] sm:$0xff] %v195
    %355 = vst [vmem:[#allocation2 + $0x8] sm:$0xff] %v197
    %356 = vst [vmem:[#allocation2 + $0x10] sm:$0xff] %v308
    %357 = vst [vmem:[#allocation2 + $0x18] sm:$0xff] %v310
    %358 = vst [vmem:[#allocation2 + $0x20] sm:$0xff] %v201
    %359 = vst [vmem:[#allocation2 + $0x28] sm:$0xff] %v203
    %360 = vst [vmem:[#allocation2 + $0x30] sm:$0xff] %v314
    %361 = vst [vmem:[#allocation2 + $0x38] sm:$0xff] %v316
    %362 = vst [vmem:[#allocation2 + $0x40] sm:$0xff] %v207
    %363 = vst [vmem:[#allocation2 + $0x48] sm:$0xff] %v209
    %364 = vst [vmem:[#allocation2 + $0x50] sm:$0xff] %v320
    %365 = vst [vmem:[#allocation2 + $0x58] sm:$0xff] %v322
    %366 = vst [vmem:[#allocation2 + $0x60] sm:$0xff] %v213
    %367 = vst [vmem:[#allocation2 + $0x68] sm:$0xff] %v215
    %368 = vst [vmem:[#allocation2 + $0x70] sm:$0xff] %v326
    %369 = vst [vmem:[#allocation2 + $0x78] sm:$0xff] %v328
    %370 = vst [vmem:[#allocation2 + $0x80] sm:$0xff] %v219
    %371 = vst [vmem:[#allocation2 + $0x88] sm:$0xff] %v221
    %372 = vst [vmem:[#allocation2 + $0x90] sm:$0xff] %v332
    %373 = vst [vmem:[#allocation2 + $0x98] sm:$0xff] %v334
    %374 = vst [vmem:[#allocation2 + $0xa0] sm:$0xff] %v225
    %375 = vst [vmem:[#allocation2 + $0xa8] sm:$0xff] %v227
    %376 = vst [vmem:[#allocation2 + $0xb0] sm:$0xff] %v338
    %377 = vst [vmem:[#allocation2 + $0xb8] sm:$0xff] %v340
    %378 = vst [vmem:[#allocation2 + $0xc0] sm:$0xff] %v231
    %379 = vst [vmem:[#allocation2 + $0xc8] sm:$0xff] %v233
    %380 = vst [vmem:[#allocation2 + $0xd0] sm:$0xff] %v344
    %381 = vst [vmem:[#allocation2 + $0xd8] sm:$0xff] %v346
    %382 = vst [vmem:[#allocation2 + $0xe0] sm:$0xff] %v237
    %383 = vst [vmem:[#allocation2 + $0xe8] sm:$0xff] %v239
    %384 = vst [vmem:[#allocation2 + $0xf0] sm:$0xff] %v350
    %385 = vst [vmem:[#allocation2 + $0xf8] sm:$0xff] %v352
    %v386 = vld [vmem:[#allocation3] sm:$0xff]
    %v387 = vld [vmem:[#allocation4] sm:$0xff]
    %s388 = smul.u32 0, 4
    %s389 = smul.addr %s388, 8
    %s390 = scalar_lea.vmem [#allocation2], %s389
    %v391 = vld [vmem:[%s390] sm:$0xff]
    %v392 = vld [vmem:[%s390 + $0x8] sm:$0xff]
    %v393 = vld [vmem:[%s390 + $0x10] sm:$0xff]
    %v394 = vld [vmem:[%s390 + $0x18] sm:$0xff]
    %v395 = vld [vmem:[#allocation5] sm:$0xff]
    %v396 = vld [vmem:[#allocation5 + $0x8] sm:$0xff]
    %v397 = vld [vmem:[#allocation5 + $0x10] sm:$0xff]
    %v398 = vld [vmem:[#allocation5 + $0x18] sm:$0xff]
    %v399 = vld [vmem:[#allocation5 + $0x20] sm:$0xff]
    %v400 = vld [vmem:[#allocation5 + $0x28] sm:$0xff]
    %v401 = vld [vmem:[#allocation5 + $0x30] sm:$0xff]
    %v402 = vld [vmem:[#allocation5 + $0x38] sm:$0xff]
    %v403 = vld [vmem:[#allocation5 + $0x40] sm:$0xff]
    %v404 = vld [vmem:[#allocation5 + $0x48] sm:$0xff]
    %v405 = vld [vmem:[#allocation5 + $0x50] sm:$0xff]
    %v406 = vld [vmem:[#allocation5 + $0x58] sm:$0xff]
    %v407 = vld [vmem:[#allocation5 + $0x60] sm:$0xff]
    %v408 = vld [vmem:[#allocation5 + $0x68] sm:$0xff]
    %v409 = vld [vmem:[#allocation5 + $0x70] sm:$0xff]
    %v410 = vld [vmem:[#allocation5 + $0x78] sm:$0xff]
    %v411 = vld [vmem:[#allocation5 + $0x80] sm:$0xff]
    %v412 = vld [vmem:[#allocation5 + $0x88] sm:$0xff]
    %v413 = vld [vmem:[#allocation5 + $0x90] sm:$0xff]
    %v414 = vld [vmem:[#allocation5 + $0x98] sm:$0xff]
    %v415 = vld [vmem:[#allocation5 + $0xa0] sm:$0xff]
    %v416 = vld [vmem:[#allocation5 + $0xa8] sm:$0xff]
    %v417 = vld [vmem:[#allocation5 + $0xb0] sm:$0xff]
    %v418 = vld [vmem:[#allocation5 + $0xb8] sm:$0xff]
    %v419 = vld [vmem:[#allocation5 + $0xc0] sm:$0xff]
    %v420 = vld [vmem:[#allocation5 + $0xc8] sm:$0xff]
    %v421 = vld [vmem:[#allocation5 + $0xd0] sm:$0xff]
    %v422 = vld [vmem:[#allocation5 + $0xd8] sm:$0xff]
    %v423 = vld [vmem:[#allocation5 + $0xe0] sm:$0xff]
    %v424 = vld [vmem:[#allocation5 + $0xe8] sm:$0xff]
    %v425 = vld [vmem:[#allocation5 + $0xf0] sm:$0xff]
    %v426 = vld [vmem:[#allocation5 + $0xf8] sm:$0xff]
    %v427 = vld [vmem:[#allocation5 + $0x100] sm:$0xff]
    %v428 = vld [vmem:[#allocation5 + $0x108] sm:$0xff]
    %v429 = vld [vmem:[#allocation5 + $0x110] sm:$0xff]
    %v430 = vld [vmem:[#allocation5 + $0x118] sm:$0xff]
    %v431 = vld [vmem:[#allocation5 + $0x120] sm:$0xff]
    %v432 = vld [vmem:[#allocation5 + $0x128] sm:$0xff]
    %v433 = vld [vmem:[#allocation5 + $0x130] sm:$0xff]
    %v434 = vld [vmem:[#allocation5 + $0x138] sm:$0xff]
    %v435 = vld [vmem:[#allocation5 + $0x140] sm:$0xff]
    %v436 = vld [vmem:[#allocation5 + $0x148] sm:$0xff]
    %v437 = vld [vmem:[#allocation5 + $0x150] sm:$0xff]
    %v438 = vld [vmem:[#allocation5 + $0x158] sm:$0xff]
    %v439 = vld [vmem:[#allocation5 + $0x160] sm:$0xff]
    %v440 = vld [vmem:[#allocation5 + $0x168] sm:$0xff]
    %v441 = vld [vmem:[#allocation5 + $0x170] sm:$0xff]
    %v442 = vld [vmem:[#allocation5 + $0x178] sm:$0xff]
    %v443 = vld [vmem:[#allocation5 + $0x180] sm:$0xff]
    %v444 = vld [vmem:[#allocation5 + $0x188] sm:$0xff]
    %v445 = vld [vmem:[#allocation5 + $0x190] sm:$0xff]
    %v446 = vld [vmem:[#allocation5 + $0x198] sm:$0xff]
    %v447 = vld [vmem:[#allocation5 + $0x1a0] sm:$0xff]
    %v448 = vld [vmem:[#allocation5 + $0x1a8] sm:$0xff]
    %v449 = vld [vmem:[#allocation5 + $0x1b0] sm:$0xff]
    %v450 = vld [vmem:[#allocation5 + $0x1b8] sm:$0xff]
    %v451 = vld [vmem:[#allocation5 + $0x1c0] sm:$0xff]
    %v452 = vld [vmem:[#allocation5 + $0x1c8] sm:$0xff]
    %v453 = vld [vmem:[#allocation5 + $0x1d0] sm:$0xff]
    %v454 = vld [vmem:[#allocation5 + $0x1d8] sm:$0xff]
    %v455 = vld [vmem:[#allocation5 + $0x1e0] sm:$0xff]
    %v456 = vld [vmem:[#allocation5 + $0x1e8] sm:$0xff]
    %v457 = vld [vmem:[#allocation5 + $0x1f0] sm:$0xff]
    %v458 = vld [vmem:[#allocation5 + $0x1f8] sm:$0xff]
    %459 = vmatprep.subr.mxu0 %v396
    %460 = vmatpush1.msra.mxu0 %v395
    %461 = vmatprep.subr.mxu0 %v400
    %462 = vmatpush1.msra.mxu0 %v399
    %463 = vmatprep.subr.mxu0 %v404
    %464 = vmatpush1.msra.mxu0 %v403
    %465 = vmatprep.subr.mxu0 %v408
    %466 = vmatpush1.msra.mxu0 %v407
    %467 = vmatprep.subr.mxu0 %v412
    %468 = vmatpush1.msra.mxu0 %v411
    %469 = vmatprep.subr.mxu0 %v416
    %470 = vmatpush1.msra.mxu0 %v415
    %471 = vmatprep.subr.mxu0 %v420
    %472 = vmatpush1.msra.mxu0 %v419
    %473 = vmatprep.subr.mxu0 %v424
    %474 = vmatpush1.msra.mxu0 %v423
    %475 = vmatprep.subr.mxu0 %v428
    %476 = vmatpush1.msra.mxu0 %v427
    %477 = vmatprep.subr.mxu0 %v432
    %478 = vmatpush1.msra.mxu0 %v431
    %479 = vmatprep.subr.mxu0 %v436
    %480 = vmatpush1.msra.mxu0 %v435
    %481 = vmatprep.subr.mxu0 %v440
    %482 = vmatpush1.msra.mxu0 %v439
    %483 = vmatprep.subr.mxu0 %v444
    %484 = vmatpush1.msra.mxu0 %v443
    %485 = vmatprep.subr.mxu0 %v448
    %486 = vmatpush1.msra.mxu0 %v447
    %487 = vmatprep.subr.mxu0 %v452
    %488 = vmatpush1.msra.mxu0 %v451
    %489 = vmatprep.subr.mxu0 %v456
    %490 = vmatpush1.msra.mxu0 %v455
    %491 = vmatprep.subr.mxu0 0.0
    %492 = vmatpush1.msra.mxu0 0.0
    %493 = vmatprep.subr.mxu0 0.0
    %494 = vmatpush1.msra.mxu0 0.0
    %495 = vmatprep.subr.mxu0 0.0
    %496 = vmatpush1.msra.mxu0 0.0
    %497 = vmatprep.subr.mxu0 0.0
    %498 = vmatpush1.msra.mxu0 0.0
    %499 = vmatprep.subr.mxu0 0.0
    %500 = vmatpush1.msra.mxu0 0.0
    %501 = vmatprep.subr.mxu0 0.0
    %502 = vmatpush1.msra.mxu0 0.0
    %503 = vmatprep.subr.mxu0 0.0
    %504 = vmatpush1.msra.mxu0 0.0
    %505 = vmatprep.subr.mxu0 0.0
    %506 = vmatpush1.msra.mxu0 0.0
    %507 = vmatprep.subr.mxu0 0.0
    %508 = vmatpush1.msra.mxu0 0.0
    %509 = vmatprep.subr.mxu0 0.0
    %510 = vmatpush1.msra.mxu0 0.0
    %511 = vmatprep.subr.mxu0 0.0
    %512 = vmatpush1.msra.mxu0 0.0
    %513 = vmatprep.subr.mxu0 0.0
    %514 = vmatpush1.msra.mxu0 0.0
    %515 = vmatprep.subr.mxu0 0.0
    %516 = vmatpush1.msra.mxu0 0.0
    %517 = vmatprep.subr.mxu0 0.0
    %518 = vmatpush1.msra.mxu0 0.0
    %519 = vmatprep.subr.mxu0 0.0
    %520 = vmatpush1.msra.mxu0 0.0
    %521 = vmatprep.subr.mxu0 0.0
    %522 = vmatpush1.msra.mxu0 0.0
    %523 = vmatprep.mubr.f32.mxu0 0.0
    %524 = vmatmul.mubr.f32.gmra.mrb[0].mxu0 %v386
    %v525 = vpop.f32.mrb[0].mxu0
    %v526 = vadd.f32 0.0, %v525
    %v527 = vpop.f32.mrb[0].mxu0
    %v528 = vadd.f32 0.0, %v527
    %529 = vdwg.mxu0
    %530 = vmatprep.subr.mxu0 %v398
    %531 = vmatpush1.msra.mxu0 %v397
    %532 = vmatprep.subr.mxu0 %v402
    %533 = vmatpush1.msra.mxu0 %v401
    %534 = vmatprep.subr.mxu0 %v406
    %535 = vmatpush1.msra.mxu0 %v405
    %536 = vmatprep.subr.mxu0 %v410
    %537 = vmatpush1.msra.mxu0 %v409
    %538 = vmatprep.subr.mxu0 %v414
    %539 = vmatpush1.msra.mxu0 %v413
    %540 = vmatprep.subr.mxu0 %v418
    %541 = vmatpush1.msra.mxu0 %v417
    %542 = vmatprep.subr.mxu0 %v422
    %543 = vmatpush1.msra.mxu0 %v421
    %544 = vmatprep.subr.mxu0 %v426
    %545 = vmatpush1.msra.mxu0 %v425
    %546 = vmatprep.subr.mxu0 %v430
    %547 = vmatpush1.msra.mxu0 %v429
    %548 = vmatprep.subr.mxu0 %v434
    %549 = vmatpush1.msra.mxu0 %v433
    %550 = vmatprep.subr.mxu0 %v438
    %551 = vmatpush1.msra.mxu0 %v437
    %552 = vmatprep.subr.mxu0 %v442
    %553 = vmatpush1.msra.mxu0 %v441
    %554 = vmatprep.subr.mxu0 %v446
    %555 = vmatpush1.msra.mxu0 %v445
    %556 = vmatprep.subr.mxu0 %v450
    %557 = vmatpush1.msra.mxu0 %v449
    %558 = vmatprep.subr.mxu0 %v454
    %559 = vmatpush1.msra.mxu0 %v453
    %560 = vmatprep.subr.mxu0 %v458
    %561 = vmatpush1.msra.mxu0 %v457
    %562 = vmatprep.subr.mxu0 0.0
    %563 = vmatpush1.msra.mxu0 0.0
    %564 = vmatprep.subr.mxu0 0.0
    %565 = vmatpush1.msra.mxu0 0.0
    %566 = vmatprep.subr.mxu0 0.0
    %567 = vmatpush1.msra.mxu0 0.0
    %568 = vmatprep.subr.mxu0 0.0
    %569 = vmatpush1.msra.mxu0 0.0
    %570 = vmatprep.subr.mxu0 0.0
    %571 = vmatpush1.msra.mxu0 0.0
    %572 = vmatprep.subr.mxu0 0.0
    %573 = vmatpush1.msra.mxu0 0.0
    %574 = vmatprep.subr.mxu0 0.0
    %575 = vmatpush1.msra.mxu0 0.0
    %576 = vmatprep.subr.mxu0 0.0
    %577 = vmatpush1.msra.mxu0 0.0
    %578 = vmatprep.subr.mxu0 0.0
    %579 = vmatpush1.msra.mxu0 0.0
    %580 = vmatprep.subr.mxu0 0.0
    %581 = vmatpush1.msra.mxu0 0.0
    %582 = vmatprep.subr.mxu0 0.0
    %583 = vmatpush1.msra.mxu0 0.0
    %584 = vmatprep.subr.mxu0 0.0
    %585 = vmatpush1.msra.mxu0 0.0
    %586 = vmatprep.subr.mxu0 0.0
    %587 = vmatpush1.msra.mxu0 0.0
    %588 = vmatprep.subr.mxu0 0.0
    %589 = vmatpush1.msra.mxu0 0.0
    %590 = vmatprep.subr.mxu0 0.0
    %591 = vmatpush1.msra.mxu0 0.0
    %592 = vmatprep.subr.mxu0 0.0
    %593 = vmatpush1.msra.mxu0 0.0
    %594 = vmatprep.mubr.f32.mxu0 0.0
    %595 = vmatmul.mubr.f32.gmra.mrb[0].mxu0 %v386
    %v596 = vpop.f32.mrb[0].mxu0
    %v597 = vadd.f32 0.0, %v596
    %v598 = vpop.f32.mrb[0].mxu0
    %v599 = vadd.f32 0.0, %v598
    %600 = vdwg.mxu0
    %v601 = vadd.f32 %v391, %v526
    %v602 = vadd.f32 %v392, %v528
    %v603 = vadd.f32 %v393, %v597
    %v604 = vadd.f32 %v394, %v599
    %v605 = vxor.u32 %v601, 2147483648
    %v606 = vmul.f32 %v605, 1.442695
    %v607 = vpow.pop %v606
    %v608 = vadd.f32 %v607, 1.0
    %v609 = vrcp.pop %v608
    %v610 = vmul.f32 1.0, %v609
    %v611 = vxor.u32 %v602, 2147483648
    %v612 = vmul.f32 %v611, 1.442695
    %v613 = vpow.pop %v612
    %v614 = vadd.f32 %v613, 1.0
    %v615 = vrcp.pop %v614
    %v616 = vmul.f32 1.0, %v615
    %v617 = vtanh.pop %v603
    %v618 = vxor.u32 %v604, 2147483648
    %v619 = vmul.f32 %v618, 1.442695
    %v620 = vpow.pop %v619
    %v621 = vadd.f32 %v620, 1.0
    %v622 = vrcp.pop %v621
    %v623 = vmul.f32 1.0, %v622
    %v624 = vmul.f32 %v616, %v387
    %v625 = vmul.f32 %v610, %v617
    %v626 = vadd.f32 %v624, %v625
    %v627 = vtanh.pop %v626
    %v628 = vmul.f32 %v623, %v627
    %s629 = smul.u32 1, 4
    %s630 = smul.addr %s629, 8
    %s631 = scalar_lea.vmem [#allocation2], %s630
    %v632 = vld [vmem:[%s631] sm:$0xff]
    %v633 = vld [vmem:[%s631 + $0x8] sm:$0xff]
    %v634 = vld [vmem:[%s631 + $0x10] sm:$0xff]
    %v635 = vld [vmem:[%s631 + $0x18] sm:$0xff]
    %636 = vmatprep.subr.mxu0 %v396
    %637 = vmatpush1.msra.mxu0 %v395
    %638 = vmatprep.subr.mxu0 %v400
    %639 = vmatpush1.msra.mxu0 %v399
    %640 = vmatprep.subr.mxu0 %v404
    %641 = vmatpush1.msra.mxu0 %v403
    %642 = vmatprep.subr.mxu0 %v408
    %643 = vmatpush1.msra.mxu0 %v407
    %644 = vmatprep.subr.mxu0 %v412
    %645 = vmatpush1.msra.mxu0 %v411
    %646 = vmatprep.subr.mxu0 %v416
    %647 = vmatpush1.msra.mxu0 %v415
    %648 = vmatprep.subr.mxu0 %v420
    %649 = vmatpush1.msra.mxu0 %v419
    %650 = vmatprep.subr.mxu0 %v424
    %651 = vmatpush1.msra.mxu0 %v423
    %652 = vmatprep.subr.mxu0 %v428
    %653 = vmatpush1.msra.mxu0 %v427
    %654 = vmatprep.subr.mxu0 %v432
    %655 = vmatpush1.msra.mxu0 %v431
    %656 = vmatprep.subr.mxu0 %v436
    %657 = vmatpush1.msra.mxu0 %v435
    %658 = vmatprep.subr.mxu0 %v440
    %659 = vmatpush1.msra.mxu0 %v439
    %660 = vmatprep.subr.mxu0 %v444
    %661 = vmatpush1.msra.mxu0 %v443
    %662 = vmatprep.subr.mxu0 %v448
    %663 = vmatpush1.msra.mxu0 %v447
    %664 = vmatprep.subr.mxu0 %v452
    %665 = vmatpush1.msra.mxu0 %v451
    %666 = vmatprep.subr.mxu0 %v456
    %667 = vmatpush1.msra.mxu0 %v455
    %668 = vmatprep.subr.mxu0 0.0
    %669 = vmatpush1.msra.mxu0 0.0
    %670 = vmatprep.subr.mxu0 0.0
    %671 = vmatpush1.msra.mxu0 0.0
    %672 = vmatprep.subr.mxu0 0.0
    %673 = vmatpush1.msra.mxu0 0.0
    %674 = vmatprep.subr.mxu0 0.0
    %675 = vmatpush1.msra.mxu0 0.0
    %676 = vmatprep.subr.mxu0 0.0
    %677 = vmatpush1.msra.mxu0 0.0
    %678 = vmatprep.subr.mxu0 0.0
    %679 = vmatpush1.msra.mxu0 0.0
    %680 = vmatprep.subr.mxu0 0.0
    %681 = vmatpush1.msra.mxu0 0.0
    %682 = vmatprep.subr.mxu0 0.0
    %683 = vmatpush1.msra.mxu0 0.0
    %684 = vmatprep.subr.mxu0 0.0
    %685 = vmatpush1.msra.mxu0 0.0
    %686 = vmatprep.subr.mxu0 0.0
    %687 = vmatpush1.msra.mxu0 0.0
    %688 = vmatprep.subr.mxu0 0.0
    %689 = vmatpush1.msra.mxu0 0.0
    %690 = vmatprep.subr.mxu0 0.0
    %691 = vmatpush1.msra.mxu0 0.0
    %692 = vmatprep.subr.mxu0 0.0
    %693 = vmatpush1.msra.mxu0 0.0
    %694 = vmatprep.subr.mxu0 0.0
    %695 = vmatpush1.msra.mxu0 0.0
    %696 = vmatprep.subr.mxu0 0.0
    %697 = vmatpush1.msra.mxu0 0.0
    %698 = vmatprep.subr.mxu0 0.0
    %699 = vmatpush1.msra.mxu0 0.0
    %700 = vmatprep.mubr.f32.mxu0 0.0
    %701 = vmatmul.mubr.f32.gmra.mrb[0].mxu0 %v628
    %v702 = vpop.f32.mrb[0].mxu0
    %v703 = vadd.f32 0.0, %v702
    %v704 = vpop.f32.mrb[0].mxu0
    %v705 = vadd.f32 0.0, %v704
    %706 = vdwg.mxu0
    %707 = vmatprep.subr.mxu0 %v398
    %708 = vmatpush1.msra.mxu0 %v397
    %709 = vmatprep.subr.mxu0 %v402
    %710 = vmatpush1.msra.mxu0 %v401
    %711 = vmatprep.subr.mxu0 %v406
    %712 = vmatpush1.msra.mxu0 %v405
    %713 = vmatprep.subr.mxu0 %v410
    %714 = vmatpush1.msra.mxu0 %v409
    %715 = vmatprep.subr.mxu0 %v414
    %716 = vmatpush1.msra.mxu0 %v413
    %717 = vmatprep.subr.mxu0 %v418
    %718 = vmatpush1.msra.mxu0 %v417
    %719 = vmatprep.subr.mxu0 %v422
    %720 = vmatpush1.msra.mxu0 %v421
    %721 = vmatprep.subr.mxu0 %v426
    %722 = vmatpush1.msra.mxu0 %v425
    %723 = vmatprep.subr.mxu0 %v430
    %724 = vmatpush1.msra.mxu0 %v429
    %725 = vmatprep.subr.mxu0 %v434
    %726 = vmatpush1.msra.mxu0 %v433
    %727 = vmatprep.subr.mxu0 %v438
    %728 = vmatpush1.msra.mxu0 %v437
    %729 = vmatprep.subr.mxu0 %v442
    %730 = vmatpush1.msra.mxu0 %v441
    %731 = vmatprep.subr.mxu0 %v446
    %732 = vmatpush1.msra.mxu0 %v445
    %733 = vmatprep.subr.mxu0 %v450
    %734 = vmatpush1.msra.mxu0 %v449
    %735 = vmatprep.subr.mxu0 %v454
    %736 = vmatpush1.msra.mxu0 %v453
    %737 = vmatprep.subr.mxu0 %v458
    %738 = vmatpush1.msra.mxu0 %v457
    %739 = vmatprep.subr.mxu0 0.0
    %740 = vmatpush1.msra.mxu0 0.0
    %741 = vmatprep.subr.mxu0 0.0
    %742 = vmatpush1.msra.mxu0 0.0
    %743 = vmatprep.subr.mxu0 0.0
    %744 = vmatpush1.msra.mxu0 0.0
    %745 = vmatprep.subr.mxu0 0.0
    %746 = vmatpush1.msra.mxu0 0.0
    %747 = vmatprep.subr.mxu0 0.0
    %748 = vmatpush1.msra.mxu0 0.0
    %749 = vmatprep.subr.mxu0 0.0
    %750 = vmatpush1.msra.mxu0 0.0
    %751 = vmatprep.subr.mxu0 0.0
    %752 = vmatpush1.msra.mxu0 0.0
    %753 = vmatprep.subr.mxu0 0.0
    %754 = vmatpush1.msra.mxu0 0.0
    %755 = vmatprep.subr.mxu0 0.0
    %756 = vmatpush1.msra.mxu0 0.0
    %757 = vmatprep.subr.mxu0 0.0
    %758 = vmatpush1.msra.mxu0 0.0
    %759 = vmatprep.subr.mxu0 0.0
    %760 = vmatpush1.msra.mxu0 0.0
    %761 = vmatprep.subr.mxu0 0.0
    %762 = vmatpush1.msra.mxu0 0.0
    %763 = vmatprep.subr.mxu0 0.0
    %764 = vmatpush1.msra.mxu0 0.0
    %765 = vmatprep.subr.mxu0 0.0
    %766 = vmatpush1.msra.mxu0 0.0
    %767 = vmatprep.subr.mxu0 0.0
    %768 = vmatpush1.msra.mxu0 0.0
    %769 = vmatprep.subr.mxu0 0.0
    %770 = vmatpush1.msra.mxu0 0.0
    %771 = vmatprep.mubr.f32.mxu0 0.0
    %772 = vmatmul.mubr.f32.gmra.mrb[0].mxu0 %v628
    %v773 = vpop.f32.mrb[0].mxu0
    %v774 = vadd.f32 0.0, %v773
    %v775 = vpop.f32.mrb[0].mxu0
    %v776 = vadd.f32 0.0, %v775
    %777 = vdwg.mxu0
    %v778 = vadd.f32 %v632, %v703
    %v779 = vadd.f32 %v633, %v705
    %v780 = vadd.f32 %v634, %v774
    %v781 = vadd.f32 %v635, %v776
    %v782 = vxor.u32 %v778, 2147483648
    %v783 = vmul.f32 %v782, 1.442695
    %v784 = vpow.pop %v783
    %v785 = vadd.f32 %v784, 1.0
    %v786 = vrcp.pop %v785
    %v787 = vmul.f32 1.0, %v786
    %v788 = vxor.u32 %v779, 2147483648
    %v789 = vmul.f32 %v788, 1.442695
    %v790 = vpow.pop %v789
    %v791 = vadd.f32 %v790, 1.0
    %v792 = vrcp.pop %v791
    %v793 = vmul.f32 1.0, %v792
    %v794 = vtanh.pop %v780
    %v795 = vxor.u32 %v781, 2147483648
    %v796 = vmul.f32 %v795, 1.442695
    %v797 = vpow.pop %v796
    %v798 = vadd.f32 %v797, 1.0
    %v799 = vrcp.pop %v798
    %v800 = vmul.f32 1.0, %v799
    %v801 = vmul.f32 %v793, %v626
    %v802 = vmul.f32 %v787, %v794
    %v803 = vadd.f32 %v801, %v802
    %v804 = vtanh.pop %v803
    %v805 = vmul.f32 %v800, %v804
    %s806 = smul.u32 2, 4
    %s807 = smul.addr %s806, 8
    %s808 = scalar_lea.vmem [#allocation2], %s807
    %v809 = vld [vmem:[%s808] sm:$0xff]
    %v810 = vld [vmem:[%s808 + $0x8] sm:$0xff]
    %v811 = vld [vmem:[%s808 + $0x10] sm:$0xff]
    %v812 = vld [vmem:[%s808 + $0x18] sm:$0xff]
    %813 = vmatprep.subr.mxu0 %v396
    %814 = vmatpush1.msra.mxu0 %v395
    %815 = vmatprep.subr.mxu0 %v400
    %816 = vmatpush1.msra.mxu0 %v399
    %817 = vmatprep.subr.mxu0 %v404
    %818 = vmatpush1.msra.mxu0 %v403
    %819 = vmatprep.subr.mxu0 %v408
    %820 = vmatpush1.msra.mxu0 %v407
    %821 = vmatprep.subr.mxu0 %v412
    %822 = vmatpush1.msra.mxu0 %v411
    %823 = vmatprep.subr.mxu0 %v416
    %824 = vmatpush1.msra.mxu0 %v415
    %825 = vmatprep.subr.mxu0 %v420
    %826 = vmatpush1.msra.mxu0 %v419
    %827 = vmatprep.subr.mxu0 %v424
    %828 = vmatpush1.msra.mxu0 %v423
    %829 = vmatprep.subr.mxu0 %v428
    %830 = vmatpush1.msra.mxu0 %v427
    %831 = vmatprep.subr.mxu0 %v432
    %832 = vmatpush1.msra.mxu0 %v431
    %833 = vmatprep.subr.mxu0 %v436
    %834 = vmatpush1.msra.mxu0 %v435
    %835 = vmatprep.subr.mxu0 %v440
    %836 = vmatpush1.msra.mxu0 %v439
    %837 = vmatprep.subr.mxu0 %v444
    %838 = vmatpush1.msra.mxu0 %v443
    %839 = vmatprep.subr.mxu0 %v448
    %840 = vmatpush1.msra.mxu0 %v447
    %841 = vmatprep.subr.mxu0 %v452
    %842 = vmatpush1.msra.mxu0 %v451
    %843 = vmatprep.subr.mxu0 %v456
    %844 = vmatpush1.msra.mxu0 %v455
    %845 = vmatprep.subr.mxu0 0.0
    %846 = vmatpush1.msra.mxu0 0.0
    %847 = vmatprep.subr.mxu0 0.0
    %848 = vmatpush1.msra.mxu0 0.0
    %849 = vmatprep.subr.mxu0 0.0
    %850 = vmatpush1.msra.mxu0 0.0
    %851 = vmatprep.subr.mxu0 0.0
    %852 = vmatpush1.msra.mxu0 0.0
    %853 = vmatprep.subr.mxu0 0.0
    %854 = vmatpush1.msra.mxu0 0.0
    %855 = vmatprep.subr.mxu0 0.0
    %856 = vmatpush1.msra.mxu0 0.0
    %857 = vmatprep.subr.mxu0 0.0
    %858 = vmatpush1.msra.mxu0 0.0
    %859 = vmatprep.subr.mxu0 0.0
    %860 = vmatpush1.msra.mxu0 0.0
    %861 = vmatprep.subr.mxu0 0.0
    %862 = vmatpush1.msra.mxu0 0.0
    %863 = vmatprep.subr.mxu0 0.0
    %864 = vmatpush1.msra.mxu0 0.0
    %865 = vmatprep.subr.mxu0 0.0
    %866 = vmatpush1.msra.mxu0 0.0
    %867 = vmatprep.subr.mxu0 0.0
    %868 = vmatpush1.msra.mxu0 0.0
    %869 = vmatprep.subr.mxu0 0.0
    %870 = vmatpush1.msra.mxu0 0.0
    %871 = vmatprep.subr.mxu0 0.0
    %872 = vmatpush1.msra.mxu0 0.0
    %873 = vmatprep.subr.mxu0 0.0
    %874 = vmatpush1.msra.mxu0 0.0
    %875 = vmatprep.subr.mxu0 0.0
    %876 = vmatpush1.msra.mxu0 0.0
    %877 = vmatprep.mubr.f32.mxu0 0.0
    %878 = vmatmul.mubr.f32.gmra.mrb[0].mxu0 %v805
    %v879 = vpop.f32.mrb[0].mxu0
    %v880 = vadd.f32 0.0, %v879
    %v881 = vpop.f32.mrb[0].mxu0
    %v882 = vadd.f32 0.0, %v881
    %883 = vdwg.mxu0
    %884 = vmatprep.subr.mxu0 %v398
    %885 = vmatpush1.msra.mxu0 %v397
    %886 = vmatprep.subr.mxu0 %v402
    %887 = vmatpush1.msra.mxu0 %v401
    %888 = vmatprep.subr.mxu0 %v406
    %889 = vmatpush1.msra.mxu0 %v405
    %890 = vmatprep.subr.mxu0 %v410
    %891 = vmatpush1.msra.mxu0 %v409
    %892 = vmatprep.subr.mxu0 %v414
    %893 = vmatpush1.msra.mxu0 %v413
    %894 = vmatprep.subr.mxu0 %v418
    %895 = vmatpush1.msra.mxu0 %v417
    %896 = vmatprep.subr.mxu0 %v422
    %897 = vmatpush1.msra.mxu0 %v421
    %898 = vmatprep.subr.mxu0 %v426
    %899 = vmatpush1.msra.mxu0 %v425
    %900 = vmatprep.subr.mxu0 %v430
    %901 = vmatpush1.msra.mxu0 %v429
    %902 = vmatprep.subr.mxu0 %v434
    %903 = vmatpush1.msra.mxu0 %v433
    %904 = vmatprep.subr.mxu0 %v438
    %905 = vmatpush1.msra.mxu0 %v437
    %906 = vmatprep.subr.mxu0 %v442
    %907 = vmatpush1.msra.mxu0 %v441
    %908 = vmatprep.subr.mxu0 %v446
    %909 = vmatpush1.msra.mxu0 %v445
    %910 = vmatprep.subr.mxu0 %v450
    %911 = vmatpush1.msra.mxu0 %v449
    %912 = vmatprep.subr.mxu0 %v454
    %913 = vmatpush1.msra.mxu0 %v453
    %914 = vmatprep.subr.mxu0 %v458
    %915 = vmatpush1.msra.mxu0 %v457
    %916 = vmatprep.subr.mxu0 0.0
    %917 = vmatpush1.msra.mxu0 0.0
    %918 = vmatprep.subr.mxu0 0.0
    %919 = vmatpush1.msra.mxu0 0.0
    %920 = vmatprep.subr.mxu0 0.0
    %921 = vmatpush1.msra.mxu0 0.0
    %922 = vmatprep.subr.mxu0 0.0
    %923 = vmatpush1.msra.mxu0 0.0
    %924 = vmatprep.subr.mxu0 0.0
    %925 = vmatpush1.msra.mxu0 0.0
    %926 = vmatprep.subr.mxu0 0.0
    %927 = vmatpush1.msra.mxu0 0.0
    %928 = vmatprep.subr.mxu0 0.0
    %929 = vmatpush1.msra.mxu0 0.0
    %930 = vmatprep.subr.mxu0 0.0
    %931 = vmatpush1.msra.mxu0 0.0
    %932 = vmatprep.subr.mxu0 0.0
    %933 = vmatpush1.msra.mxu0 0.0
    %934 = vmatprep.subr.mxu0 0.0
    %935 = vmatpush1.msra.mxu0 0.0
    %936 = vmatprep.subr.mxu0 0.0
    %937 = vmatpush1.msra.mxu0 0.0
    %938 = vmatprep.subr.mxu0 0.0
    %939 = vmatpush1.msra.mxu0 0.0
    %940 = vmatprep.subr.mxu0 0.0
    %941 = vmatpush1.msra.mxu0 0.0
    %942 = vmatprep.subr.mxu0 0.0
    %943 = vmatpush1.msra.mxu0 0.0
    %944 = vmatprep.subr.mxu0 0.0
    %945 = vmatpush1.msra.mxu0 0.0
    %946 = vmatprep.subr.mxu0 0.0
    %947 = vmatpush1.msra.mxu0 0.0
    %948 = vmatprep.mubr.f32.mxu0 0.0
    %949 = vmatmul.mubr.f32.gmra.mrb[0].mxu0 %v805
    %v950 = vpop.f32.mrb[0].mxu0
    %v951 = vadd.f32 0.0, %v950
    %v952 = vpop.f32.mrb[0].mxu0
    %v953 = vadd.f32 0.0, %v952
    %954 = vdwg.mxu0
    %v955 = vadd.f32 %v809, %v880
    %v956 = vadd.f32 %v810, %v882
    %v957 = vadd.f32 %v811, %v951
    %v958 = vadd.f32 %v812, %v953
    %v959 = vxor.u32 %v955, 2147483648
    %v960 = vmul.f32 %v959, 1.442695
    %v961 = vpow.pop %v960
    %v962 = vadd.f32 %v961, 1.0
    %v963 = vrcp.pop %v962
    %v964 = vmul.f32 1.0, %v963
    %v965 = vxor.u32 %v956, 2147483648
    %v966 = vmul.f32 %v965, 1.442695
    %v967 = vpow.pop %v966
    %v968 = vadd.f32 %v967, 1.0
    %v969 = vrcp.pop %v968
    %v970 = vmul.f32 1.0, %v969
    %v971 = vtanh.pop %v957
    %v972 = vxor.u32 %v958, 2147483648
    %v973 = vmul.f32 %v972, 1.442695
    %v974 = vpow.pop %v973
    %v975 = vadd.f32 %v974, 1.0
    %v976 = vrcp.pop %v975
    %v977 = vmul.f32 1.0, %v976
    %v978 = vmul.f32 %v970, %v803
    %v979 = vmul.f32 %v964, %v971
    %v980 = vadd.f32 %v978, %v979
    %v981 = vtanh.pop %v980
    %v982 = vmul.f32 %v977, %v981
    %s983 = smul.u32 3, 4
    %s984 = smul.addr %s983, 8
    %s985 = scalar_lea.vmem [#allocation2], %s984
    %v986 = vld [vmem:[%s985] sm:$0xff]
    %v987 = vld [vmem:[%s985 + $0x8] sm:$0xff]
    %v988 = vld [vmem:[%s985 + $0x10] sm:$0xff]
    %v989 = vld [vmem:[%s985 + $0x18] sm:$0xff]
    %990 = vmatprep.subr.mxu0 %v396
    %991 = vmatpush1.msra.mxu0 %v395
    %992 = vmatprep.subr.mxu0 %v400
    %993 = vmatpush1.msra.mxu0 %v399
    %994 = vmatprep.subr.mxu0 %v404
    %995 = vmatpush1.msra.mxu0 %v403
    %996 = vmatprep.subr.mxu0 %v408
    %997 = vmatpush1.msra.mxu0 %v407
    %998 = vmatprep.subr.mxu0 %v412
    %999 = vmatpush1.msra.mxu0 %v411
    %1000 = vmatprep.subr.mxu0 %v416
    %1001 = vmatpush1.msra.mxu0 %v415
    %1002 = vmatprep.subr.mxu0 %v420
    %1003 = vmatpush1.msra.mxu0 %v419
    %1004 = vmatprep.subr.mxu0 %v424
    %1005 = vmatpush1.msra.mxu0 %v423
    %1006 = vmatprep.subr.mxu0 %v428
    %1007 = vmatpush1.msra.mxu0 %v427
    %1008 = vmatprep.subr.mxu0 %v432
    %1009 = vmatpush1.msra.mxu0 %v431
    %1010 = vmatprep.subr.mxu0 %v436
    %1011 = vmatpush1.msra.mxu0 %v435
    %1012 = vmatprep.subr.mxu0 %v440
    %1013 = vmatpush1.msra.mxu0 %v439
    %1014 = vmatprep.subr.mxu0 %v444
    %1015 = vmatpush1.msra.mxu0 %v443
    %1016 = vmatprep.subr.mxu0 %v448
    %1017 = vmatpush1.msra.mxu0 %v447
    %1018 = vmatprep.subr.mxu0 %v452
    %1019 = vmatpush1.msra.mxu0 %v451
    %1020 = vmatprep.subr.mxu0 %v456
    %1021 = vmatpush1.msra.mxu0 %v455
    %1022 = vmatprep.subr.mxu0 0.0
    %1023 = vmatpush1.msra.mxu0 0.0
    %1024 = vmatprep.subr.mxu0 0.0
    %1025 = vmatpush1.msra.mxu0 0.0
    %1026 = vmatprep.subr.mxu0 0.0
    %1027 = vmatpush1.msra.mxu0 0.0
    %1028 = vmatprep.subr.mxu0 0.0
    %1029 = vmatpush1.msra.mxu0 0.0
    %1030 = vmatprep.subr.mxu0 0.0
    %1031 = vmatpush1.msra.mxu0 0.0
    %1032 = vmatprep.subr.mxu0 0.0
    %1033 = vmatpush1.msra.mxu0 0.0
    %1034 = vmatprep.subr.mxu0 0.0
    %1035 = vmatpush1.msra.mxu0 0.0
    %1036 = vmatprep.subr.mxu0 0.0
    %1037 = vmatpush1.msra.mxu0 0.0
    %1038 = vmatprep.subr.mxu0 0.0
    %1039 = vmatpush1.msra.mxu0 0.0
    %1040 = vmatprep.subr.mxu0 0.0
    %1041 = vmatpush1.msra.mxu0 0.0
    %1042 = vmatprep.subr.mxu0 0.0
    %1043 = vmatpush1.msra.mxu0 0.0
    %1044 = vmatprep.subr.mxu0 0.0
    %1045 = vmatpush1.msra.mxu0 0.0
    %1046 = vmatprep.subr.mxu0 0.0
    %1047 = vmatpush1.msra.mxu0 0.0
    %1048 = vmatprep.subr.mxu0 0.0
    %1049 = vmatpush1.msra.mxu0 0.0
    %1050 = vmatprep.subr.mxu0 0.0
    %1051 = vmatpush1.msra.mxu0 0.0
    %1052 = vmatprep.subr.mxu0 0.0
    %1053 = vmatpush1.msra.mxu0 0.0
    %1054 = vmatprep.mubr.f32.mxu0 0.0
    %1055 = vmatmul.mubr.f32.gmra.mrb[0].mxu0 %v982
    %v1056 = vpop.f32.mrb[0].mxu0
    %v1057 = vadd.f32 0.0, %v1056
    %v1058 = vpop.f32.mrb[0].mxu0
    %v1059 = vadd.f32 0.0, %v1058
    %1060 = vdwg.mxu0
    %1061 = vmatprep.subr.mxu0 %v398
    %1062 = vmatpush1.msra.mxu0 %v397
    %1063 = vmatprep.subr.mxu0 %v402
    %1064 = vmatpush1.msra.mxu0 %v401
    %1065 = vmatprep.subr.mxu0 %v406
    %1066 = vmatpush1.msra.mxu0 %v405
    %1067 = vmatprep.subr.mxu0 %v410
    %1068 = vmatpush1.msra.mxu0 %v409
    %1069 = vmatprep.subr.mxu0 %v414
    %1070 = vmatpush1.msra.mxu0 %v413
    %1071 = vmatprep.subr.mxu0 %v418
    %1072 = vmatpush1.msra.mxu0 %v417
    %1073 = vmatprep.subr.mxu0 %v422
    %1074 = vmatpush1.msra.mxu0 %v421
    %1075 = vmatprep.subr.mxu0 %v426
    %1076 = vmatpush1.msra.mxu0 %v425
    %1077 = vmatprep.subr.mxu0 %v430
    %1078 = vmatpush1.msra.mxu0 %v429
    %1079 = vmatprep.subr.mxu0 %v434
    %1080 = vmatpush1.msra.mxu0 %v433
    %1081 = vmatprep.subr.mxu0 %v438
    %1082 = vmatpush1.msra.mxu0 %v437
    %1083 = vmatprep.subr.mxu0 %v442
    %1084 = vmatpush1.msra.mxu0 %v441
    %1085 = vmatprep.subr.mxu0 %v446
    %1086 = vmatpush1.msra.mxu0 %v445
    %1087 = vmatprep.subr.mxu0 %v450
    %1088 = vmatpush1.msra.mxu0 %v449
    %1089 = vmatprep.subr.mxu0 %v454
    %1090 = vmatpush1.msra.mxu0 %v453
    %1091 = vmatprep.subr.mxu0 %v458
    %1092 = vmatpush1.msra.mxu0 %v457
    %1093 = vmatprep.subr.mxu0 0.0
    %1094 = vmatpush1.msra.mxu0 0.0
    %1095 = vmatprep.subr.mxu0 0.0
    %1096 = vmatpush1.msra.mxu0 0.0
    %1097 = vmatprep.subr.mxu0 0.0
    %1098 = vmatpush1.msra.mxu0 0.0
    %1099 = vmatprep.subr.mxu0 0.0
    %1100 = vmatpush1.msra.mxu0 0.0
    %1101 = vmatprep.subr.mxu0 0.0
    %1102 = vmatpush1.msra.mxu0 0.0
    %1103 = vmatprep.subr.mxu0 0.0
    %1104 = vmatpush1.msra.mxu0 0.0
    %1105 = vmatprep.subr.mxu0 0.0
    %1106 = vmatpush1.msra.mxu0 0.0
    %1107 = vmatprep.subr.mxu0 0.0
    %1108 = vmatpush1.msra.mxu0 0.0
    %1109 = vmatprep.subr.mxu0 0.0
    %1110 = vmatpush1.msra.mxu0 0.0
    %1111 = vmatprep.subr.mxu0 0.0
    %1112 = vmatpush1.msra.mxu0 0.0
    %1113 = vmatprep.subr.mxu0 0.0
    %1114 = vmatpush1.msra.mxu0 0.0
    %1115 = vmatprep.subr.mxu0 0.0
    %1116 = vmatpush1.msra.mxu0 0.0
    %1117 = vmatprep.subr.mxu0 0.0
    %1118 = vmatpush1.msra.mxu0 0.0
    %1119 = vmatprep.subr.mxu0 0.0
    %1120 = vmatpush1.msra.mxu0 0.0
    %1121 = vmatprep.subr.mxu0 0.0
    %1122 = vmatpush1.msra.mxu0 0.0
    %1123 = vmatprep.subr.mxu0 0.0
    %1124 = vmatpush1.msra.mxu0 0.0
    %1125 = vmatprep.mubr.f32.mxu0 0.0
    %1126 = vmatmul.mubr.f32.gmra.mrb[0].mxu0 %v982
    %v1127 = vpop.f32.mrb[0].mxu0
    %v1128 = vadd.f32 0.0, %v1127
    %v1129 = vpop.f32.mrb[0].mxu0
    %v1130 = vadd.f32 0.0, %v1129
    %1131 = vdwg.mxu0
    %v1132 = vadd.f32 %v986, %v1057
    %v1133 = vadd.f32 %v987, %v1059
    %v1134 = vadd.f32 %v988, %v1128
    %v1135 = vadd.f32 %v989, %v1130
    %v1136 = vxor.u32 %v1132, 2147483648
    %v1137 = vmul.f32 %v1136, 1.442695
    %v1138 = vpow.pop %v1137
    %v1139 = vadd.f32 %v1138, 1.0
    %v1140 = vrcp.pop %v1139
    %v1141 = vmul.f32 1.0, %v1140
    %v1142 = vxor.u32 %v1133, 2147483648
    %v1143 = vmul.f32 %v1142, 1.442695
    %v1144 = vpow.pop %v1143
    %v1145 = vadd.f32 %v1144, 1.0
    %v1146 = vrcp.pop %v1145
    %v1147 = vmul.f32 1.0, %v1146
    %v1148 = vtanh.pop %v1134
    %v1149 = vxor.u32 %v1135, 2147483648
    %v1150 = vmul.f32 %v1149, 1.442695
    %v1151 = vpow.pop %v1150
    %v1152 = vadd.f32 %v1151, 1.0
    %v1153 = vrcp.pop %v1152
    %v1154 = vmul.f32 1.0, %v1153
    %v1155 = vmul.f32 %v1147, %v980
    %v1156 = vmul.f32 %v1141, %v1148
    %v1157 = vadd.f32 %v1155, %v1156
    %v1158 = vtanh.pop %v1157
    %v1159 = vmul.f32 %v1154, %v1158
    %s1160 = smul.u32 4, 4
    %s1161 = smul.addr %s1160, 8
    %s1162 = scalar_lea.vmem [#allocation2], %s1161
    %v1163 = vld [vmem:[%s1162] sm:$0xff]
    %v1164 = vld [vmem:[%s1162 + $0x8] sm:$0xff]
    %v1165 = vld [vmem:[%s1162 + $0x10] sm:$0xff]
    %v1166 = vld [vmem:[%s1162 + $0x18] sm:$0xff]
    %1167 = vmatprep.subr.mxu0 %v396
    %1168 = vmatpush1.msra.mxu0 %v395
    %1169 = vmatprep.subr.mxu0 %v400
    %1170 = vmatpush1.msra.mxu0 %v399
    %1171 = vmatprep.subr.mxu0 %v404
    %1172 = vmatpush1.msra.mxu0 %v403
    %1173 = vmatprep.subr.mxu0 %v408
    %1174 = vmatpush1.msra.mxu0 %v407
    %1175 = vmatprep.subr.mxu0 %v412
    %1176 = vmatpush1.msra.mxu0 %v411
    %1177 = vmatprep.subr.mxu0 %v416
    %1178 = vmatpush1.msra.mxu0 %v415
    %1179 = vmatprep.subr.mxu0 %v420
    %1180 = vmatpush1.msra.mxu0 %v419
    %1181 = vmatprep.subr.mxu0 %v424
    %1182 = vmatpush1.msra.mxu0 %v423
    %1183 = vmatprep.subr.mxu0 %v428
    %1184 = vmatpush1.msra.mxu0 %v427
    %1185 = vmatprep.subr.mxu0 %v432
    %1186 = vmatpush1.msra.mxu0 %v431
    %1187 = vmatprep.subr.mxu0 %v436
    %1188 = vmatpush1.msra.mxu0 %v435
    %1189 = vmatprep.subr.mxu0 %v440
    %1190 = vmatpush1.msra.mxu0 %v439
    %1191 = vmatprep.subr.mxu0 %v444
    %1192 = vmatpush1.msra.mxu0 %v443
    %1193 = vmatprep.subr.mxu0 %v448
    %1194 = vmatpush1.msra.mxu0 %v447
    %1195 = vmatprep.subr.mxu0 %v452
    %1196 = vmatpush1.msra.mxu0 %v451
    %1197 = vmatprep.subr.mxu0 %v456
    %1198 = vmatpush1.msra.mxu0 %v455
    %1199 = vmatprep.subr.mxu0 0.0
    %1200 = vmatpush1.msra.mxu0 0.0
    %1201 = vmatprep.subr.mxu0 0.0
    %1202 = vmatpush1.msra.mxu0 0.0
    %1203 = vmatprep.subr.mxu0 0.0
    %1204 = vmatpush1.msra.mxu0 0.0
    %1205 = vmatprep.subr.mxu0 0.0
    %1206 = vmatpush1.msra.mxu0 0.0
    %1207 = vmatprep.subr.mxu0 0.0
    %1208 = vmatpush1.msra.mxu0 0.0
    %1209 = vmatprep.subr.mxu0 0.0
    %1210 = vmatpush1.msra.mxu0 0.0
    %1211 = vmatprep.subr.mxu0 0.0
    %1212 = vmatpush1.msra.mxu0 0.0
    %1213 = vmatprep.subr.mxu0 0.0
    %1214 = vmatpush1.msra.mxu0 0.0
    %1215 = vmatprep.subr.mxu0 0.0
    %1216 = vmatpush1.msra.mxu0 0.0
    %1217 = vmatprep.subr.mxu0 0.0
    %1218 = vmatpush1.msra.mxu0 0.0
    %1219 = vmatprep.subr.mxu0 0.0
    %1220 = vmatpush1.msra.mxu0 0.0
    %1221 = vmatprep.subr.mxu0 0.0
    %1222 = vmatpush1.msra.mxu0 0.0
    %1223 = vmatprep.subr.mxu0 0.0
    %1224 = vmatpush1.msra.mxu0 0.0
    %1225 = vmatprep.subr.mxu0 0.0
    %1226 = vmatpush1.msra.mxu0 0.0
    %1227 = vmatprep.subr.mxu0 0.0
    %1228 = vmatpush1.msra.mxu0 0.0
    %1229 = vmatprep.subr.mxu0 0.0
    %1230 = vmatpush1.msra.mxu0 0.0
    %1231 = vmatprep.mubr.f32.mxu0 0.0
    %1232 = vmatmul.mubr.f32.gmra.mrb[0].mxu0 %v1159
    %v1233 = vpop.f32.mrb[0].mxu0
    %v1234 = vadd.f32 0.0, %v1233
    %v1235 = vpop.f32.mrb[0].mxu0
    %v1236 = vadd.f32 0.0, %v1235
    %1237 = vdwg.mxu0
    %1238 = vmatprep.subr.mxu0 %v398
    %1239 = vmatpush1.msra.mxu0 %v397
    %1240 = vmatprep.subr.mxu0 %v402
    %1241 = vmatpush1.msra.mxu0 %v401
    %1242 = vmatprep.subr.mxu0 %v406
    %1243 = vmatpush1.msra.mxu0 %v405
    %1244 = vmatprep.subr.mxu0 %v410
    %1245 = vmatpush1.msra.mxu0 %v409
    %1246 = vmatprep.subr.mxu0 %v414
    %1247 = vmatpush1.msra.mxu0 %v413
    %1248 = vmatprep.subr.mxu0 %v418
    %1249 = vmatpush1.msra.mxu0 %v417
    %1250 = vmatprep.subr.mxu0 %v422
    %1251 = vmatpush1.msra.mxu0 %v421
    %1252 = vmatprep.subr.mxu0 %v426
    %1253 = vmatpush1.msra.mxu0 %v425
    %1254 = vmatprep.subr.mxu0 %v430
    %1255 = vmatpush1.msra.mxu0 %v429
    %1256 = vmatprep.subr.mxu0 %v434
    %1257 = vmatpush1.msra.mxu0 %v433
    %1258 = vmatprep.subr.mxu0 %v438
    %1259 = vmatpush1.msra.mxu0 %v437
    %1260 = vmatprep.subr.mxu0 %v442
    %1261 = vmatpush1.msra.mxu0 %v441
    %1262 = vmatprep.subr.mxu0 %v446
    %1263 = vmatpush1.msra.mxu0 %v445
    %1264 = vmatprep.subr.mxu0 %v450
    %1265 = vmatpush1.msra.mxu0 %v449
    %1266 = vmatprep.subr.mxu0 %v454
    %1267 = vmatpush1.msra.mxu0 %v453
    %1268 = vmatprep.subr.mxu0 %v458
    %1269 = vmatpush1.msra.mxu0 %v457
    %1270 = vmatprep.subr.mxu0 0.0
    %1271 = vmatpush1.msra.mxu0 0.0
    %1272 = vmatprep.subr.mxu0 0.0
    %1273 = vmatpush1.msra.mxu0 0.0
    %1274 = vmatprep.subr.mxu0 0.0
    %1275 = vmatpush1.msra.mxu0 0.0
    %1276 = vmatprep.subr.mxu0 0.0
    %1277 = vmatpush1.msra.mxu0 0.0
    %1278 = vmatprep.subr.mxu0 0.0
    %1279 = vmatpush1.msra.mxu0 0.0
    %1280 = vmatprep.subr.mxu0 0.0
    %1281 = vmatpush1.msra.mxu0 0.0
    %1282 = vmatprep.subr.mxu0 0.0
    %1283 = vmatpush1.msra.mxu0 0.0
    %1284 = vmatprep.subr.mxu0 0.0
    %1285 = vmatpush1.msra.mxu0 0.0
    %1286 = vmatprep.subr.mxu0 0.0
    %1287 = vmatpush1.msra.mxu0 0.0
    %1288 = vmatprep.subr.mxu0 0.0
    %1289 = vmatpush1.msra.mxu0 0.0
    %1290 = vmatprep.subr.mxu0 0.0
    %1291 = vmatpush1.msra.mxu0 0.0
    %1292 = vmatprep.subr.mxu0 0.0
    %1293 = vmatpush1.msra.mxu0 0.0
    %1294 = vmatprep.subr.mxu0 0.0
    %1295 = vmatpush1.msra.mxu0 0.0
    %1296 = vmatprep.subr.mxu0 0.0
    %1297 = vmatpush1.msra.mxu0 0.0
    %1298 = vmatprep.subr.mxu0 0.0
    %1299 = vmatpush1.msra.mxu0 0.0
    %1300 = vmatprep.subr.mxu0 0.0
    %1301 = vmatpush1.msra.mxu0 0.0
    %1302 = vmatprep.mubr.f32.mxu0 0.0
    %1303 = vmatmul.mubr.f32.gmra.mrb[0].mxu0 %v1159
    %v1304 = vpop.f32.mrb[0].mxu0
    %v1305 = vadd.f32 0.0, %v1304
    %v1306 = vpop.f32.mrb[0].mxu0
    %v1307 = vadd.f32 0.0, %v1306
    %1308 = vdwg.mxu0
    %v1309 = vadd.f32 %v1163, %v1234
    %v1310 = vadd.f32 %v1164, %v1236
    %v1311 = vadd.f32 %v1165, %v1305
    %v1312 = vadd.f32 %v1166, %v1307
    %v1313 = vxor.u32 %v1309, 2147483648
    %v1314 = vmul.f32 %v1313, 1.442695
    %v1315 = vpow.pop %v1314
    %v1316 = vadd.f32 %v1315, 1.0
    %v1317 = vrcp.pop %v1316
    %v1318 = vmul.f32 1.0, %v1317
    %v1319 = vxor.u32 %v1310, 2147483648
    %v1320 = vmul.f32 %v1319, 1.442695
    %v1321 = vpow.pop %v1320
    %v1322 = vadd.f32 %v1321, 1.0
    %v1323 = vrcp.pop %v1322
    %v1324 = vmul.f32 1.0, %v1323
    %v1325 = vtanh.pop %v1311
    %v1326 = vxor.u32 %v1312, 2147483648
    %v1327 = vmul.f32 %v1326, 1.442695
    %v1328 = vpow.pop %v1327
    %v1329 = vadd.f32 %v1328, 1.0
    %v1330 = vrcp.pop %v1329
    %v1331 = vmul.f32 1.0, %v1330
    %v1332 = vmul.f32 %v1324, %v1157
    %v1333 = vmul.f32 %v1318, %v1325
    %v1334 = vadd.f32 %v1332, %v1333
    %v1335 = vtanh.pop %v1334
    %v1336 = vmul.f32 %v1331, %v1335
    %s1337 = smul.u32 5, 4
    %s1338 = smul.addr %s1337, 8
    %s1339 = scalar_lea.vmem [#allocation2], %s1338
    %v1340 = vld [vmem:[%s1339] sm:$0xff]
    %v1341 = vld [vmem:[%s1339 + $0x8] sm:$0xff]
    %v1342 = vld [vmem:[%s1339 + $0x10] sm:$0xff]
    %v1343 = vld [vmem:[%s1339 + $0x18] sm:$0xff]
    %1344 = vmatprep.subr.mxu0 %v396
    %1345 = vmatpush1.msra.mxu0 %v395
    %1346 = vmatprep.subr.mxu0 %v400
    %1347 = vmatpush1.msra.mxu0 %v399
    %1348 = vmatprep.subr.mxu0 %v404
    %1349 = vmatpush1.msra.mxu0 %v403
    %1350 = vmatprep.subr.mxu0 %v408
    %1351 = vmatpush1.msra.mxu0 %v407
    %1352 = vmatprep.subr.mxu0 %v412
    %1353 = vmatpush1.msra.mxu0 %v411
    %1354 = vmatprep.subr.mxu0 %v416
    %1355 = vmatpush1.msra.mxu0 %v415
    %1356 = vmatprep.subr.mxu0 %v420
    %1357 = vmatpush1.msra.mxu0 %v419
    %1358 = vmatprep.subr.mxu0 %v424
    %1359 = vmatpush1.msra.mxu0 %v423
    %1360 = vmatprep.subr.mxu0 %v428
    %1361 = vmatpush1.msra.mxu0 %v427
    %1362 = vmatprep.subr.mxu0 %v432
    %1363 = vmatpush1.msra.mxu0 %v431
    %1364 = vmatprep.subr.mxu0 %v436
    %1365 = vmatpush1.msra.mxu0 %v435
    %1366 = vmatprep.subr.mxu0 %v440
    %1367 = vmatpush1.msra.mxu0 %v439
    %1368 = vmatprep.subr.mxu0 %v444
    %1369 = vmatpush1.msra.mxu0 %v443
    %1370 = vmatprep.subr.mxu0 %v448
    %1371 = vmatpush1.msra.mxu0 %v447
    %1372 = vmatprep.subr.mxu0 %v452
    %1373 = vmatpush1.msra.mxu0 %v451
    %1374 = vmatprep.subr.mxu0 %v456
    %1375 = vmatpush1.msra.mxu0 %v455
    %1376 = vmatprep.subr.mxu0 0.0
    %1377 = vmatpush1.msra.mxu0 0.0
    %1378 = vmatprep.subr.mxu0 0.0
    %1379 = vmatpush1.msra.mxu0 0.0
    %1380 = vmatprep.subr.mxu0 0.0
    %1381 = vmatpush1.msra.mxu0 0.0
    %1382 = vmatprep.subr.mxu0 0.0
    %1383 = vmatpush1.msra.mxu0 0.0
    %1384 = vmatprep.subr.mxu0 0.0
    %1385 = vmatpush1.msra.mxu0 0.0
    %1386 = vmatprep.subr.mxu0 0.0
    %1387 = vmatpush1.msra.mxu0 0.0
    %1388 = vmatprep.subr.mxu0 0.0
    %1389 = vmatpush1.msra.mxu0 0.0
    %1390 = vmatprep.subr.mxu0 0.0
    %1391 = vmatpush1.msra.mxu0 0.0
    %1392 = vmatprep.subr.mxu0 0.0
    %1393 = vmatpush1.msra.mxu0 0.0
    %1394 = vmatprep.subr.mxu0 0.0
    %1395 = vmatpush1.msra.mxu0 0.0
    %1396 = vmatprep.subr.mxu0 0.0
    %1397 = vmatpush1.msra.mxu0 0.0
    %1398 = vmatprep.subr.mxu0 0.0
    %1399 = vmatpush1.msra.mxu0 0.0
    %1400 = vmatprep.subr.mxu0 0.0
    %1401 = vmatpush1.msra.mxu0 0.0
    %1402 = vmatprep.subr.mxu0 0.0
    %1403 = vmatpush1.msra.mxu0 0.0
    %1404 = vmatprep.subr.mxu0 0.0
    %1405 = vmatpush1.msra.mxu0 0.0
    %1406 = vmatprep.subr.mxu0 0.0
    %1407 = vmatpush1.msra.mxu0 0.0
    %1408 = vmatprep.mubr.f32.mxu0 0.0
    %1409 = vmatmul.mubr.f32.gmra.mrb[0].mxu0 %v1336
    %v1410 = vpop.f32.mrb[0].mxu0
    %v1411 = vadd.f32 0.0, %v1410
    %v1412 = vpop.f32.mrb[0].mxu0
    %v1413 = vadd.f32 0.0, %v1412
    %1414 = vdwg.mxu0
    %1415 = vmatprep.subr.mxu0 %v398
    %1416 = vmatpush1.msra.mxu0 %v397
    %1417 = vmatprep.subr.mxu0 %v402
    %1418 = vmatpush1.msra.mxu0 %v401
    %1419 = vmatprep.subr.mxu0 %v406
    %1420 = vmatpush1.msra.mxu0 %v405
    %1421 = vmatprep.subr.mxu0 %v410
    %1422 = vmatpush1.msra.mxu0 %v409
    %1423 = vmatprep.subr.mxu0 %v414
    %1424 = vmatpush1.msra.mxu0 %v413
    %1425 = vmatprep.subr.mxu0 %v418
    %1426 = vmatpush1.msra.mxu0 %v417
    %1427 = vmatprep.subr.mxu0 %v422
    %1428 = vmatpush1.msra.mxu0 %v421
    %1429 = vmatprep.subr.mxu0 %v426
    %1430 = vmatpush1.msra.mxu0 %v425
    %1431 = vmatprep.subr.mxu0 %v430
    %1432 = vmatpush1.msra.mxu0 %v429
    %1433 = vmatprep.subr.mxu0 %v434
    %1434 = vmatpush1.msra.mxu0 %v433
    %1435 = vmatprep.subr.mxu0 %v438
    %1436 = vmatpush1.msra.mxu0 %v437
    %1437 = vmatprep.subr.mxu0 %v442
    %1438 = vmatpush1.msra.mxu0 %v441
    %1439 = vmatprep.subr.mxu0 %v446
    %1440 = vmatpush1.msra.mxu0 %v445
    %1441 = vmatprep.subr.mxu0 %v450
    %1442 = vmatpush1.msra.mxu0 %v449
    %1443 = vmatprep.subr.mxu0 %v454
    %1444 = vmatpush1.msra.mxu0 %v453
    %1445 = vmatprep.subr.mxu0 %v458
    %1446 = vmatpush1.msra.mxu0 %v457
    %1447 = vmatprep.subr.mxu0 0.0
    %1448 = vmatpush1.msra.mxu0 0.0
    %1449 = vmatprep.subr.mxu0 0.0
    %1450 = vmatpush1.msra.mxu0 0.0
    %1451 = vmatprep.subr.mxu0 0.0
    %1452 = vmatpush1.msra.mxu0 0.0
    %1453 = vmatprep.subr.mxu0 0.0
    %1454 = vmatpush1.msra.mxu0 0.0
    %1455 = vmatprep.subr.mxu0 0.0
    %1456 = vmatpush1.msra.mxu0 0.0
    %1457 = vmatprep.subr.mxu0 0.0
    %1458 = vmatpush1.msra.mxu0 0.0
    %1459 = vmatprep.subr.mxu0 0.0
    %1460 = vmatpush1.msra.mxu0 0.0
    %1461 = vmatprep.subr.mxu0 0.0
    %1462 = vmatpush1.msra.mxu0 0.0
    %1463 = vmatprep.subr.mxu0 0.0
    %1464 = vmatpush1.msra.mxu0 0.0
    %1465 = vmatprep.subr.mxu0 0.0
    %1466 = vmatpush1.msra.mxu0 0.0
    %1467 = vmatprep.subr.mxu0 0.0
    %1468 = vmatpush1.msra.mxu0 0.0
    %1469 = vmatprep.subr.mxu0 0.0
    %1470 = vmatpush1.msra.mxu0 0.0
    %1471 = vmatprep.subr.mxu0 0.0
    %1472 = vmatpush1.msra.mxu0 0.0
    %1473 = vmatprep.subr.mxu0 0.0
    %1474 = vmatpush1.msra.mxu0 0.0
    %1475 = vmatprep.subr.mxu0 0.0
    %1476 = vmatpush1.msra.mxu0 0.0
    %1477 = vmatprep.subr.mxu0 0.0
    %1478 = vmatpush1.msra.mxu0 0.0
    %1479 = vmatprep.mubr.f32.mxu0 0.0
    %1480 = vmatmul.mubr.f32.gmra.mrb[0].mxu0 %v1336
    %v1481 = vpop.f32.mrb[0].mxu0
    %v1482 = vadd.f32 0.0, %v1481
    %v1483 = vpop.f32.mrb[0].mxu0
    %v1484 = vadd.f32 0.0, %v1483
    %1485 = vdwg.mxu0
    %v1486 = vadd.f32 %v1340, %v1411
    %v1487 = vadd.f32 %v1341, %v1413
    %v1488 = vadd.f32 %v1342, %v1482
    %v1489 = vadd.f32 %v1343, %v1484
    %v1490 = vxor.u32 %v1486, 2147483648
    %v1491 = vmul.f32 %v1490, 1.442695
    %v1492 = vpow.pop %v1491
    %v1493 = vadd.f32 %v1492, 1.0
    %v1494 = vrcp.pop %v1493
    %v1495 = vmul.f32 1.0, %v1494
    %v1496 = vxor.u32 %v1487, 2147483648
    %v1497 = vmul.f32 %v1496, 1.442695
    %v1498 = vpow.pop %v1497
    %v1499 = vadd.f32 %v1498, 1.0
    %v1500 = vrcp.pop %v1499
    %v1501 = vmul.f32 1.0, %v1500
    %v1502 = vtanh.pop %v1488
    %v1503 = vxor.u32 %v1489, 2147483648
    %v1504 = vmul.f32 %v1503, 1.442695
    %v1505 = vpow.pop %v1504
    %v1506 = vadd.f32 %v1505, 1.0
    %v1507 = vrcp.pop %v1506
    %v1508 = vmul.f32 1.0, %v1507
    %v1509 = vmul.f32 %v1501, %v1334
    %v1510 = vmul.f32 %v1495, %v1502
    %v1511 = vadd.f32 %v1509, %v1510
    %v1512 = vtanh.pop %v1511
    %v1513 = vmul.f32 %v1508, %v1512
    %s1514 = smul.u32 6, 4
    %s1515 = smul.addr %s1514, 8
    %s1516 = scalar_lea.vmem [#allocation2], %s1515
    %v1517 = vld [vmem:[%s1516] sm:$0xff]
    %v1518 = vld [vmem:[%s1516 + $0x8] sm:$0xff]
    %v1519 = vld [vmem:[%s1516 + $0x10] sm:$0xff]
    %v1520 = vld [vmem:[%s1516 + $0x18] sm:$0xff]
    %1521 = vmatprep.subr.mxu0 %v396
    %1522 = vmatpush1.msra.mxu0 %v395
    %1523 = vmatprep.subr.mxu0 %v400
    %1524 = vmatpush1.msra.mxu0 %v399
    %1525 = vmatprep.subr.mxu0 %v404
    %1526 = vmatpush1.msra.mxu0 %v403
    %1527 = vmatprep.subr.mxu0 %v408
    %1528 = vmatpush1.msra.mxu0 %v407
    %1529 = vmatprep.subr.mxu0 %v412
    %1530 = vmatpush1.msra.mxu0 %v411
    %1531 = vmatprep.subr.mxu0 %v416
    %1532 = vmatpush1.msra.mxu0 %v415
    %1533 = vmatprep.subr.mxu0 %v420
    %1534 = vmatpush1.msra.mxu0 %v419
    %1535 = vmatprep.subr.mxu0 %v424
    %1536 = vmatpush1.msra.mxu0 %v423
    %1537 = vmatprep.subr.mxu0 %v428
    %1538 = vmatpush1.msra.mxu0 %v427
    %1539 = vmatprep.subr.mxu0 %v432
    %1540 = vmatpush1.msra.mxu0 %v431
    %1541 = vmatprep.subr.mxu0 %v436
    %1542 = vmatpush1.msra.mxu0 %v435
    %1543 = vmatprep.subr.mxu0 %v440
    %1544 = vmatpush1.msra.mxu0 %v439
    %1545 = vmatprep.subr.mxu0 %v444
    %1546 = vmatpush1.msra.mxu0 %v443
    %1547 = vmatprep.subr.mxu0 %v448
    %1548 = vmatpush1.msra.mxu0 %v447
    %1549 = vmatprep.subr.mxu0 %v452
    %1550 = vmatpush1.msra.mxu0 %v451
    %1551 = vmatprep.subr.mxu0 %v456
    %1552 = vmatpush1.msra.mxu0 %v455
    %1553 = vmatprep.subr.mxu0 0.0
    %1554 = vmatpush1.msra.mxu0 0.0
    %1555 = vmatprep.subr.mxu0 0.0
    %1556 = vmatpush1.msra.mxu0 0.0
    %1557 = vmatprep.subr.mxu0 0.0
    %1558 = vmatpush1.msra.mxu0 0.0
    %1559 = vmatprep.subr.mxu0 0.0
    %1560 = vmatpush1.msra.mxu0 0.0
    %1561 = vmatprep.subr.mxu0 0.0
    %1562 = vmatpush1.msra.mxu0 0.0
    %1563 = vmatprep.subr.mxu0 0.0
    %1564 = vmatpush1.msra.mxu0 0.0
    %1565 = vmatprep.subr.mxu0 0.0
    %1566 = vmatpush1.msra.mxu0 0.0
    %1567 = vmatprep.subr.mxu0 0.0
    %1568 = vmatpush1.msra.mxu0 0.0
    %1569 = vmatprep.subr.mxu0 0.0
    %1570 = vmatpush1.msra.mxu0 0.0
    %1571 = vmatprep.subr.mxu0 0.0
    %1572 = vmatpush1.msra.mxu0 0.0
    %1573 = vmatprep.subr.mxu0 0.0
    %1574 = vmatpush1.msra.mxu0 0.0
    %1575 = vmatprep.subr.mxu0 0.0
    %1576 = vmatpush1.msra.mxu0 0.0
    %1577 = vmatprep.subr.mxu0 0.0
    %1578 = vmatpush1.msra.mxu0 0.0
    %1579 = vmatprep.subr.mxu0 0.0
    %1580 = vmatpush1.msra.mxu0 0.0
    %1581 = vmatprep.subr.mxu0 0.0
    %1582 = vmatpush1.msra.mxu0 0.0
    %1583 = vmatprep.subr.mxu0 0.0
    %1584 = vmatpush1.msra.mxu0 0.0
    %1585 = vmatprep.mubr.f32.mxu0 0.0
    %1586 = vmatmul.mubr.f32.gmra.mrb[0].mxu0 %v1513
    %v1587 = vpop.f32.mrb[0].mxu0
    %v1588 = vadd.f32 0.0, %v1587
    %v1589 = vpop.f32.mrb[0].mxu0
    %v1590 = vadd.f32 0.0, %v1589
    %1591 = vdwg.mxu0
    %1592 = vmatprep.subr.mxu0 %v398
    %1593 = vmatpush1.msra.mxu0 %v397
    %1594 = vmatprep.subr.mxu0 %v402
    %1595 = vmatpush1.msra.mxu0 %v401
    %1596 = vmatprep.subr.mxu0 %v406
    %1597 = vmatpush1.msra.mxu0 %v405
    %1598 = vmatprep.subr.mxu0 %v410
    %1599 = vmatpush1.msra.mxu0 %v409
    %1600 = vmatprep.subr.mxu0 %v414
    %1601 = vmatpush1.msra.mxu0 %v413
    %1602 = vmatprep.subr.mxu0 %v418
    %1603 = vmatpush1.msra.mxu0 %v417
    %1604 = vmatprep.subr.mxu0 %v422
    %1605 = vmatpush1.msra.mxu0 %v421
    %1606 = vmatprep.subr.mxu0 %v426
    %1607 = vmatpush1.msra.mxu0 %v425
    %1608 = vmatprep.subr.mxu0 %v430
    %1609 = vmatpush1.msra.mxu0 %v429
    %1610 = vmatprep.subr.mxu0 %v434
    %1611 = vmatpush1.msra.mxu0 %v433
    %1612 = vmatprep.subr.mxu0 %v438
    %1613 = vmatpush1.msra.mxu0 %v437
    %1614 = vmatprep.subr.mxu0 %v442
    %1615 = vmatpush1.msra.mxu0 %v441
    %1616 = vmatprep.subr.mxu0 %v446
    %1617 = vmatpush1.msra.mxu0 %v445
    %1618 = vmatprep.subr.mxu0 %v450
    %1619 = vmatpush1.msra.mxu0 %v449
    %1620 = vmatprep.subr.mxu0 %v454
    %1621 = vmatpush1.msra.mxu0 %v453
    %1622 = vmatprep.subr.mxu0 %v458
    %1623 = vmatpush1.msra.mxu0 %v457
    %1624 = vmatprep.subr.mxu0 0.0
    %1625 = vmatpush1.msra.mxu0 0.0
    %1626 = vmatprep.subr.mxu0 0.0
    %1627 = vmatpush1.msra.mxu0 0.0
    %1628 = vmatprep.subr.mxu0 0.0
    %1629 = vmatpush1.msra.mxu0 0.0
    %1630 = vmatprep.subr.mxu0 0.0
    %1631 = vmatpush1.msra.mxu0 0.0
    %1632 = vmatprep.subr.mxu0 0.0
    %1633 = vmatpush1.msra.mxu0 0.0
    %1634 = vmatprep.subr.mxu0 0.0
    %1635 = vmatpush1.msra.mxu0 0.0
    %1636 = vmatprep.subr.mxu0 0.0
    %1637 = vmatpush1.msra.mxu0 0.0
    %1638 = vmatprep.subr.mxu0 0.0
    %1639 = vmatpush1.msra.mxu0 0.0
    %1640 = vmatprep.subr.mxu0 0.0
    %1641 = vmatpush1.msra.mxu0 0.0
    %1642 = vmatprep.subr.mxu0 0.0
    %1643 = vmatpush1.msra.mxu0 0.0
    %1644 = vmatprep.subr.mxu0 0.0
    %1645 = vmatpush1.msra.mxu0 0.0
    %1646 = vmatprep.subr.mxu0 0.0
    %1647 = vmatpush1.msra.mxu0 0.0
    %1648 = vmatprep.subr.mxu0 0.0
    %1649 = vmatpush1.msra.mxu0 0.0
    %1650 = vmatprep.subr.mxu0 0.0
    %1651 = vmatpush1.msra.mxu0 0.0
    %1652 = vmatprep.subr.mxu0 0.0
    %1653 = vmatpush1.msra.mxu0 0.0
    %1654 = vmatprep.subr.mxu0 0.0
    %1655 = vmatpush1.msra.mxu0 0.0
    %1656 = vmatprep.mubr.f32.mxu0 0.0
    %1657 = vmatmul.mubr.f32.gmra.mrb[0].mxu0 %v1513
    %v1658 = vpop.f32.mrb[0].mxu0
    %v1659 = vadd.f32 0.0, %v1658
    %v1660 = vpop.f32.mrb[0].mxu0
    %v1661 = vadd.f32 0.0, %v1660
    %1662 = vdwg.mxu0
    %v1663 = vadd.f32 %v1517, %v1588
    %v1664 = vadd.f32 %v1518, %v1590
    %v1665 = vadd.f32 %v1519, %v1659
    %v1666 = vadd.f32 %v1520, %v1661
    %v1667 = vxor.u32 %v1663, 2147483648
    %v1668 = vmul.f32 %v1667, 1.442695
    %v1669 = vpow.pop %v1668
    %v1670 = vadd.f32 %v1669, 1.0
    %v1671 = vrcp.pop %v1670
    %v1672 = vmul.f32 1.0, %v1671
    %v1673 = vxor.u32 %v1664, 2147483648
    %v1674 = vmul.f32 %v1673, 1.442695
    %v1675 = vpow.pop %v1674
    %v1676 = vadd.f32 %v1675, 1.0
    %v1677 = vrcp.pop %v1676
    %v1678 = vmul.f32 1.0, %v1677
    %v1679 = vtanh.pop %v1665
    %v1680 = vxor.u32 %v1666, 2147483648
    %v1681 = vmul.f32 %v1680, 1.442695
    %v1682 = vpow.pop %v1681
    %v1683 = vadd.f32 %v1682, 1.0
    %v1684 = vrcp.pop %v1683
    %v1685 = vmul.f32 1.0, %v1684
    %v1686 = vmul.f32 %v1678, %v1511
    %v1687 = vmul.f32 %v1672, %v1679
    %v1688 = vadd.f32 %v1686, %v1687
    %v1689 = vtanh.pop %v1688
    %v1690 = vmul.f32 %v1685, %v1689
    %s1691 = smul.u32 7, 4
    %s1692 = smul.addr %s1691, 8
    %s1693 = scalar_lea.vmem [#allocation2], %s1692
    %v1694 = vld [vmem:[%s1693] sm:$0xff]
    %v1695 = vld [vmem:[%s1693 + $0x8] sm:$0xff]
    %v1696 = vld [vmem:[%s1693 + $0x10] sm:$0xff]
    %v1697 = vld [vmem:[%s1693 + $0x18] sm:$0xff]
    %1698 = vmatprep.subr.mxu0 %v396
    %1699 = vmatpush1.msra.mxu0 %v395
    %1700 = vmatprep.subr.mxu0 %v400
    %1701 = vmatpush1.msra.mxu0 %v399
    %1702 = vmatprep.subr.mxu0 %v404
    %1703 = vmatpush1.msra.mxu0 %v403
    %1704 = vmatprep.subr.mxu0 %v408
    %1705 = vmatpush1.msra.mxu0 %v407
    %1706 = vmatprep.subr.mxu0 %v412
    %1707 = vmatpush1.msra.mxu0 %v411
    %1708 = vmatprep.subr.mxu0 %v416
    %1709 = vmatpush1.msra.mxu0 %v415
    %1710 = vmatprep.subr.mxu0 %v420
    %1711 = vmatpush1.msra.mxu0 %v419
    %1712 = vmatprep.subr.mxu0 %v424
    %1713 = vmatpush1.msra.mxu0 %v423
    %1714 = vmatprep.subr.mxu0 %v428
    %1715 = vmatpush1.msra.mxu0 %v427
    %1716 = vmatprep.subr.mxu0 %v432
    %1717 = vmatpush1.msra.mxu0 %v431
    %1718 = vmatprep.subr.mxu0 %v436
    %1719 = vmatpush1.msra.mxu0 %v435
    %1720 = vmatprep.subr.mxu0 %v440
    %1721 = vmatpush1.msra.mxu0 %v439
    %1722 = vmatprep.subr.mxu0 %v444
    %1723 = vmatpush1.msra.mxu0 %v443
    %1724 = vmatprep.subr.mxu0 %v448
    %1725 = vmatpush1.msra.mxu0 %v447
    %1726 = vmatprep.subr.mxu0 %v452
    %1727 = vmatpush1.msra.mxu0 %v451
    %1728 = vmatprep.subr.mxu0 %v456
    %1729 = vmatpush1.msra.mxu0 %v455
    %1730 = vmatprep.subr.mxu0 0.0
    %1731 = vmatpush1.msra.mxu0 0.0
    %1732 = vmatprep.subr.mxu0 0.0
    %1733 = vmatpush1.msra.mxu0 0.0
    %1734 = vmatprep.subr.mxu0 0.0
    %1735 = vmatpush1.msra.mxu0 0.0
    %1736 = vmatprep.subr.mxu0 0.0
    %1737 = vmatpush1.msra.mxu0 0.0
    %1738 = vmatprep.subr.mxu0 0.0
    %1739 = vmatpush1.msra.mxu0 0.0
    %1740 = vmatprep.subr.mxu0 0.0
    %1741 = vmatpush1.msra.mxu0 0.0
    %1742 = vmatprep.subr.mxu0 0.0
    %1743 = vmatpush1.msra.mxu0 0.0
    %1744 = vmatprep.subr.mxu0 0.0
    %1745 = vmatpush1.msra.mxu0 0.0
    %1746 = vmatprep.subr.mxu0 0.0
    %1747 = vmatpush1.msra.mxu0 0.0
    %1748 = vmatprep.subr.mxu0 0.0
    %1749 = vmatpush1.msra.mxu0 0.0
    %1750 = vmatprep.subr.mxu0 0.0
    %1751 = vmatpush1.msra.mxu0 0.0
    %1752 = vmatprep.subr.mxu0 0.0
    %1753 = vmatpush1.msra.mxu0 0.0
    %1754 = vmatprep.subr.mxu0 0.0
    %1755 = vmatpush1.msra.mxu0 0.0
    %1756 = vmatprep.subr.mxu0 0.0
    %1757 = vmatpush1.msra.mxu0 0.0
    %1758 = vmatprep.subr.mxu0 0.0
    %1759 = vmatpush1.msra.mxu0 0.0
    %1760 = vmatprep.subr.mxu0 0.0
    %1761 = vmatpush1.msra.mxu0 0.0
    %1762 = vmatprep.mubr.f32.mxu0 0.0
    %1763 = vmatmul.mubr.f32.gmra.mrb[0].mxu0 %v1690
    %v1764 = vpop.f32.mrb[0].mxu0
    %v1765 = vadd.f32 0.0, %v1764
    %v1766 = vpop.f32.mrb[0].mxu0
    %v1767 = vadd.f32 0.0, %v1766
    %1768 = vdwg.mxu0
    %1769 = vmatprep.subr.mxu0 %v398
    %1770 = vmatpush1.msra.mxu0 %v397
    %1771 = vmatprep.subr.mxu0 %v402
    %1772 = vmatpush1.msra.mxu0 %v401
    %1773 = vmatprep.subr.mxu0 %v406
    %1774 = vmatpush1.msra.mxu0 %v405
    %1775 = vmatprep.subr.mxu0 %v410
    %1776 = vmatpush1.msra.mxu0 %v409
    %1777 = vmatprep.subr.mxu0 %v414
    %1778 = vmatpush1.msra.mxu0 %v413
    %1779 = vmatprep.subr.mxu0 %v418
    %1780 = vmatpush1.msra.mxu0 %v417
    %1781 = vmatprep.subr.mxu0 %v422
    %1782 = vmatpush1.msra.mxu0 %v421
    %1783 = vmatprep.subr.mxu0 %v426
    %1784 = vmatpush1.msra.mxu0 %v425
    %1785 = vmatprep.subr.mxu0 %v430
    %1786 = vmatpush1.msra.mxu0 %v429
    %1787 = vmatprep.subr.mxu0 %v434
    %1788 = vmatpush1.msra.mxu0 %v433
    %1789 = vmatprep.subr.mxu0 %v438
    %1790 = vmatpush1.msra.mxu0 %v437
    %1791 = vmatprep.subr.mxu0 %v442
    %1792 = vmatpush1.msra.mxu0 %v441
    %1793 = vmatprep.subr.mxu0 %v446
    %1794 = vmatpush1.msra.mxu0 %v445
    %1795 = vmatprep.subr.mxu0 %v450
    %1796 = vmatpush1.msra.mxu0 %v449
    %1797 = vmatprep.subr.mxu0 %v454
    %1798 = vmatpush1.msra.mxu0 %v453
    %1799 = vmatprep.subr.mxu0 %v458
    %1800 = vmatpush1.msra.mxu0 %v457
    %1801 = vmatprep.subr.mxu0 0.0
    %1802 = vmatpush1.msra.mxu0 0.0
    %1803 = vmatprep.subr.mxu0 0.0
    %1804 = vmatpush1.msra.mxu0 0.0
    %1805 = vmatprep.subr.mxu0 0.0
    %1806 = vmatpush1.msra.mxu0 0.0
    %1807 = vmatprep.subr.mxu0 0.0
    %1808 = vmatpush1.msra.mxu0 0.0
    %1809 = vmatprep.subr.mxu0 0.0
    %1810 = vmatpush1.msra.mxu0 0.0
    %1811 = vmatprep.subr.mxu0 0.0
    %1812 = vmatpush1.msra.mxu0 0.0
    %1813 = vmatprep.subr.mxu0 0.0
    %1814 = vmatpush1.msra.mxu0 0.0
    %1815 = vmatprep.subr.mxu0 0.0
    %1816 = vmatpush1.msra.mxu0 0.0
    %1817 = vmatprep.subr.mxu0 0.0
    %1818 = vmatpush1.msra.mxu0 0.0
    %1819 = vmatprep.subr.mxu0 0.0
    %1820 = vmatpush1.msra.mxu0 0.0
    %1821 = vmatprep.subr.mxu0 0.0
    %1822 = vmatpush1.msra.mxu0 0.0
    %1823 = vmatprep.subr.mxu0 0.0
    %1824 = vmatpush1.msra.mxu0 0.0
    %1825 = vmatprep.subr.mxu0 0.0
    %1826 = vmatpush1.msra.mxu0 0.0
    %1827 = vmatprep.subr.mxu0 0.0
    %1828 = vmatpush1.msra.mxu0 0.0
    %1829 = vmatprep.subr.mxu0 0.0
    %1830 = vmatpush1.msra.mxu0 0.0
    %1831 = vmatprep.subr.mxu0 0.0
    %1832 = vmatpush1.msra.mxu0 0.0
    %1833 = vmatprep.mubr.f32.mxu0 0.0
    %1834 = vmatmul.mubr.f32.gmra.mrb[0].mxu0 %v1690
    %v1835 = vpop.f32.mrb[0].mxu0
    %v1836 = vadd.f32 0.0, %v1835
    %v1837 = vpop.f32.mrb[0].mxu0
    %v1838 = vadd.f32 0.0, %v1837
    %1839 = vdwg.mxu0
    %v1840 = vadd.f32 %v1694, %v1765
    %v1841 = vadd.f32 %v1695, %v1767
    %v1842 = vadd.f32 %v1696, %v1836
    %v1843 = vadd.f32 %v1697, %v1838
    %v1844 = vxor.u32 %v1840, 2147483648
    %v1845 = vmul.f32 %v1844, 1.442695
    %v1846 = vpow.pop %v1845
    %v1847 = vadd.f32 %v1846, 1.0
    %v1848 = vrcp.pop %v1847
    %v1849 = vmul.f32 1.0, %v1848
    %v1850 = vxor.u32 %v1841, 2147483648
    %v1851 = vmul.f32 %v1850, 1.442695
    %v1852 = vpow.pop %v1851
    %v1853 = vadd.f32 %v1852, 1.0
    %v1854 = vrcp.pop %v1853
    %v1855 = vmul.f32 1.0, %v1854
    %v1856 = vtanh.pop %v1842
    %v1857 = vxor.u32 %v1843, 2147483648
    %v1858 = vmul.f32 %v1857, 1.442695
    %v1859 = vpow.pop %v1858
    %v1860 = vadd.f32 %v1859, 1.0
    %v1861 = vrcp.pop %v1860
    %v1862 = vmul.f32 1.0, %v1861
    %v1863 = vmul.f32 %v1855, %v1688
    %v1864 = vmul.f32 %v1849, %v1856
    %v1865 = vadd.f32 %v1863, %v1864
    %v1866 = vtanh.pop %v1865
    %v1867 = vmul.f32 %v1862, %v1866
    %1868 = vst [vmem:[#allocation3] sm:$0xff] %v1867
    %1869 = vst [vmem:[#allocation4] sm:$0xff] %v1865
    // Predicated region
    $region38: #{tpu_custom_call.1} parent=1 // pred_check
      %p1870 = pneg %p52
    $region39: #{tpu_custom_call.1} parent=1 // pred_check_branch
      %1872 = sbr.rel (%p1870) target = $region41
    $region40: #{tpu_custom_call.1} parent=1 // pred_region
      %v1873 = vld [vmem:[#allocation8] sm:$0xff]
      %v1874 = vld [vmem:[#allocation8 + $0x8] sm:$0xff]
      %v1875 = vld [vmem:[#allocation8 + $0x10] sm:$0xff]
      %v1876 = vld [vmem:[#allocation8 + $0x18] sm:$0xff]
      %v1877 = vld [vmem:[#allocation8 + $0x20] sm:$0xff]
      %v1878 = vld [vmem:[#allocation8 + $0x28] sm:$0xff]
      %v1879 = vld [vmem:[#allocation8 + $0x30] sm:$0xff]
      %v1880 = vld [vmem:[#allocation8 + $0x38] sm:$0xff]
      %v1881 = vld [vmem:[#allocation8 + $0x40] sm:$0xff]
      %v1882 = vld [vmem:[#allocation8 + $0x48] sm:$0xff]
      %v1883 = vld [vmem:[#allocation8 + $0x50] sm:$0xff]
      %v1884 = vld [vmem:[#allocation8 + $0x58] sm:$0xff]
      %v1885 = vld [vmem:[#allocation8 + $0x60] sm:$0xff]
      %v1886 = vld [vmem:[#allocation8 + $0x68] sm:$0xff]
      %v1887 = vld [vmem:[#allocation8 + $0x70] sm:$0xff]
      %v1888 = vld [vmem:[#allocation8 + $0x78] sm:$0xff]
      %v1889 = vld [vmem:[%s5] sm:$0x1]
      %v1891 = vlaneseq
      %v1892 = vshrl.u32 %v1891, 7
      %v1893 = vsub.s32 0, %v1892
      %v1894 = vrot.slane %v1889, %v1893
      %1896 = vmatprep.subr.mxu0 0.0
      %1897 = vmatpush1.msra.mxu0 %v1873
      %1898 = vmatprep.subr.mxu0 0.0
      %1899 = vmatpush1.msra.mxu0 %v1874
      %1900 = vmatprep.subr.mxu0 0.0
      %1901 = vmatpush1.msra.mxu0 %v1875
      %1902 = vmatprep.subr.mxu0 0.0
      %1903 = vmatpush1.msra.mxu0 %v1876
      %1904 = vmatprep.subr.mxu0 0.0
      %1905 = vmatpush1.msra.mxu0 %v1877
      %1906 = vmatprep.subr.mxu0 0.0
      %1907 = vmatpush1.msra.mxu0 %v1878
      %1908 = vmatprep.subr.mxu0 0.0
      %1909 = vmatpush1.msra.mxu0 %v1879
      %1910 = vmatprep.subr.mxu0 0.0
      %1911 = vmatpush1.msra.mxu0 %v1880
      %1912 = vmatprep.subr.mxu0 0.0
      %1913 = vmatpush1.msra.mxu0 %v1881
      %1914 = vmatprep.subr.mxu0 0.0
      %1915 = vmatpush1.msra.mxu0 %v1882
      %1916 = vmatprep.subr.mxu0 0.0
      %1917 = vmatpush1.msra.mxu0 %v1883
      %1918 = vmatprep.subr.mxu0 0.0
      %1919 = vmatpush1.msra.mxu0 %v1884
      %1920 = vmatprep.subr.mxu0 0.0
      %1921 = vmatpush1.msra.mxu0 %v1885
      %1922 = vmatprep.subr.mxu0 0.0
      %1923 = vmatpush1.msra.mxu0 %v1886
      %1924 = vmatprep.subr.mxu0 0.0
      %1925 = vmatpush1.msra.mxu0 %v1887
      %1926 = vmatprep.subr.mxu0 0.0
      %1927 = vmatpush1.msra.mxu0 %v1888
      %1928 = vmatprep.subr.mxu0 0.0
      %1929 = vmatpush1.msra.mxu0 0.0
      %1930 = vmatprep.subr.mxu0 0.0
      %1931 = vmatpush1.msra.mxu0 0.0
      %1932 = vmatprep.subr.mxu0 0.0
      %1933 = vmatpush1.msra.mxu0 0.0
      %1934 = vmatprep.subr.mxu0 0.0
      %1935 = vmatpush1.msra.mxu0 0.0
      %1936 = vmatprep.subr.mxu0 0.0
      %1937 = vmatpush1.msra.mxu0 0.0
      %1938 = vmatprep.subr.mxu0 0.0
      %1939 = vmatpush1.msra.mxu0 0.0
      %1940 = vmatprep.subr.mxu0 0.0
      %1941 = vmatpush1.msra.mxu0 0.0
      %1942 = vmatprep.subr.mxu0 0.0
      %1943 = vmatpush1.msra.mxu0 0.0
      %1944 = vmatprep.subr.mxu0 0.0
      %1945 = vmatpush1.msra.mxu0 0.0
      %1946 = vmatprep.subr.mxu0 0.0
      %1947 = vmatpush1.msra.mxu0 0.0
      %1948 = vmatprep.subr.mxu0 0.0
      %1949 = vmatpush1.msra.mxu0 0.0
      %1950 = vmatprep.subr.mxu0 0.0
      %1951 = vmatpush1.msra.mxu0 0.0
      %1952 = vmatprep.subr.mxu0 0.0
      %1953 = vmatpush1.msra.mxu0 0.0
      %1954 = vmatprep.subr.mxu0 0.0
      %1955 = vmatpush1.msra.mxu0 0.0
      %1956 = vmatprep.subr.mxu0 0.0
      %1957 = vmatpush1.msra.mxu0 0.0
      %1958 = vmatprep.subr.mxu0 0.0
      %1959 = vmatpush1.msra.mxu0 0.0
      %1960 = vmatprep.mubr.f32.mxu0 0.0
      %1961 = vmatmul.mubr.f32.gmra.mrb[0].mxu0 %v1867
      %v1962 = vpop.f32.mrb[0].mxu0
      %v1963 = vadd.f32 %v1894, %v1962
      %v1964 = vpop.f32.mrb[0].mxu0
      %1965 = vdwg.mxu0
      %1966 = vst [vmem:[#allocation10] sm:$0xff] %v1963
    $region41: #{tpu_custom_call.1} parent=1 // pred_fallthru
      _
    // Predicated region
    $region42: #{tpu_custom_call.1} parent=1 // pred_check
      _
    $region43: #{tpu_custom_call.1} parent=1 // pred_check_branch
      %1968 = sbr.rel (0) target = $region45
    $region44: #{tpu_custom_call.1} parent=1 // pred_region
      %s1970 = ssub.s32 128, 128
      %1971 = vsyncadd [#allocation7], %s1970
      %s1973 = sshll.u32 [#allocation10], 4
      %s1974 = int_to_ptr.vmem [resolvable:$true] %s1973
      %1976 = dma.vmem_to_hbm [thread:$0]  %s1974, 128, %s6, [#allocation7]
    $region45: #{tpu_custom_call.1} parent=1 // pred_fallthru
      _
    // Predicated region
    $region46: #{tpu_custom_call.1} parent=1 // pred_check
      _
    $region47: #{tpu_custom_call.1} parent=1 // pred_check_branch
      %1978 = sbr.rel (0) target = $region49
    $region48: #{tpu_custom_call.1} parent=1 // pred_region
      %1979 = dma.done [#allocation7], 128
    $region49: #{tpu_custom_call.1} parent=1 // pred_fallthru
      _
    %1980 = vsyncpa [#allocation6], 1
    %1981 = vsyncpa [#allocation9], 1
    %1982 = vsyncpa [#allocation7], 1

</llo_original>
